<compile_context>
chip_gen: v6e
topology: v6e:2x2x1
jax: 0.10.0
libtpu: 0.0.40
codegen_flags: <defaults>
</compile_context>

<pallas_src>
import functools

import jax
import jax.numpy as jnp
from jax.experimental import pallas as pl
from jax.experimental.pallas import tpu as pltpu

# -------------------- scaled-down model config --------------------
C_IN = 3           # RGB input
C_STEM = 16        # stem conv channels
C_EXP = 64         # MBConv expanded channels (expand ratio 4)
C_SE = 16          # SE bottleneck channels
NUM_FEATURES = 64  # stands in for efficientnet_b4 classifier[1].in_features (1792)
HIDDEN = 32        # config['hidden_size']
NUM_CLASSES = 5    # config['num_classes']  (DR grades 0..4)
BN_EPS = 1e-5

CP = 128           # lane-dense padded channel width used inside the kernel
KK = 128           # padded im2col K for the stem (3*3*C_IN = 27 -> 128)
N_AFF = 16         # padded row count of the packed affine-param table


def _silu(x):
    return x * jax.nn.sigmoid(x)


# -------------------- the fused Pallas kernel --------------------
def fused_mbconv_kernel(patches_ref, w_ref, wdw_ref, aff_ref, out_ref, xepad_ref,
                        *, HO, WO):
    """One image per grid step.  Everything after the JAX-side im2col of the
    3-channel input stays VMEM-resident:
      stem conv -> expand 1x1 -> dw 3x3 (halo) -> SE -> project(+skip)
      -> head 1x1 -> GAP -> Linear -> ReLU -> Linear  (padded logits out).
    All channel axes are zero-padded to CP=128 lanes; padded lanes carry exact
    zeros through every stage (zero-padded weights / scales / shifts)."""
    HW = HO * WO
    aff = aff_ref[...]                        # (N_AFF, CP) f32: folded BN + biases
    wdw = wdw_ref[...]                        # (9, CP)     f32: depthwise taps

    # ---- stem: Conv3x3 s2 p1 (im2col matmul) + BN + SiLU ----
    y = jnp.dot(patches_ref[0], w_ref[0], preferred_element_type=jnp.float32)
    y = y * aff[0:1] + aff[1:2]
    x0 = _silu(y)                             # (HW, CP) f32

    # ---- MBConv expand 1x1 + BN + SiLU ----
    y = jnp.dot(x0.astype(jnp.bfloat16), w_ref[1], preferred_element_type=jnp.float32)
    y = y * aff[2:3] + aff[3:4]
    xe = _silu(y)                             # (HW, CP) f32

    # ---- depthwise 3x3 s1 p1 via in-VMEM zero halo (no im2col slab in HBM) ----
    xepad_ref[...] = jnp.zeros((HO + 2, WO + 2, CP), jnp.float32)
    xepad_ref[1:HO + 1, 1:WO + 1, :] = xe.reshape(HO, WO, CP)
    acc = jnp.zeros((HO, WO, CP), jnp.float32)
    for t in range(9):
        di, dj = t // 3, t % 3
        tap = xepad_ref[di:di + HO, dj:dj + WO, :]
        acc = acc + tap * wdw[t:t + 1, :].reshape(1, 1, CP)
    y = acc.reshape(HW, CP)
    y = y * aff[4:5] + aff[5:6]
    xd = _silu(y)                             # (HW, CP) f32

    # ---- squeeze-excite: GAP -> FC(SiLU) -> FC(sigmoid) ----
    s = jnp.mean(xd, axis=0, keepdims=True)                       # (1, CP)
    g = jnp.dot(s.astype(jnp.bfloat16), w_ref[2],
                preferred_element_type=jnp.float32) + aff[6:7]
    g = _silu(g)
    g = jnp.dot(g.astype(jnp.bfloat16), w_ref[3],
                preferred_element_type=jnp.float32) + aff[7:8]
    g = jax.nn.sigmoid(g)                                         # (1, CP)

    # ---- project 1x1 + BN + residual; SE gate fused into the A operand ----
    xs = (xd * g).astype(jnp.bfloat16)
    y = jnp.dot(xs, w_ref[4], preferred_element_type=jnp.float32)
    xp = y * aff[8:9] + aff[9:10] + x0                            # (HW, CP)

    # ---- head conv 1x1 + BN + SiLU ----
    y = jnp.dot(xp.astype(jnp.bfloat16), w_ref[5], preferred_element_type=jnp.float32)
    y = y * aff[10:11] + aff[11:12]
    xh = _silu(y)                                                 # (HW, CP)

    # ---- GAP + classifier: Dropout(id) -> Linear -> ReLU -> Dropout(id) -> Linear ----
    f = jnp.mean(xh, axis=0, keepdims=True)                       # (1, CP)
    h = jnp.dot(f.astype(jnp.bfloat16), w_ref[6],
                preferred_element_type=jnp.float32) + aff[12:13]
    h = jnp.maximum(h, 0.0)
    logits = jnp.dot(h.astype(jnp.bfloat16), w_ref[7],
                     preferred_element_type=jnp.float32) + aff[13:14]
    out_ref[0] = logits                                           # lane-dense (1, CP)


# -------------------- JAX-side parameter folding / packing --------------------
def fold_bn(bn):
    scale = bn["gamma"] / jnp.sqrt(bn["var"] + BN_EPS)
    shift = bn["beta"] - bn["mean"] * scale
    return scale, shift


def conv_w_to_matmul(w_pt):
    """PyTorch (Cout, Cin, kh, kw) -> (kh*kw*Cin, Cout), matching im2col order."""
    cout, cin, kh, kw = w_pt.shape
    return jnp.transpose(w_pt, (2, 3, 1, 0)).reshape(kh * kw * cin, cout)


def _pad2(a, rows, cols):
    r, c = a.shape
    return jnp.pad(a, ((0, rows - r), (0, cols - c)))


def pack_params(params):
    """Fold BN, zero-pad everything to CP=128 lanes, pack into 3 arrays."""
    w_list = [
        conv_w_to_matmul(params["stem_w"]),            # (27, 16)
        conv_w_to_matmul(params["exp_w"]),             # (16, 64)
        conv_w_to_matmul(params["se_w1"]),             # (64, 16)
        conv_w_to_matmul(params["se_w2"]),             # (16, 64)
        conv_w_to_matmul(params["proj_w"]),            # (64, 16)
        conv_w_to_matmul(params["head_w"]),            # (16, 64)
        jnp.transpose(params["lin1_w"]),               # (64, 32)
        jnp.transpose(params["lin2_w"]),               # (32, 5)
    ]
    w_stack = jnp.stack(
        [_pad2(w.astype(jnp.float32), CP, CP) for w in w_list]
    ).astype(jnp.bfloat16)                             # (8, CP, CP) bf16

    wdw = jnp.transpose(params["dw_w"].reshape(C_EXP, 9), (1, 0))   # (9, C_EXP)
    wdw = _pad2(wdw.astype(jnp.float32), 9, CP)                     # (9, CP) f32

    affs = []
    for bn_name in ("stem_bn", "exp_bn", "dw_bn"):
        sc, sh = fold_bn(params[bn_name])
        affs += [sc, sh]
    affs += [params["se_b1"], params["se_b2"]]
    sc, sh = fold_bn(params["proj_bn"]); affs += [sc, sh]
    sc, sh = fold_bn(params["head_bn"]); affs += [sc, sh]
    affs += [params["lin1_b"], params["lin2_b"]]
    aff = jnp.stack([jnp.pad(a.astype(jnp.float32), (0, CP - a.shape[0])) for a in affs])
    aff = jnp.pad(aff, ((0, N_AFF - aff.shape[0]), (0, 0)))         # (16, CP) f32
    return w_stack, wdw, aff


def stem_patches(x_nchw):
    """NCHW -> lane-padded bf16 im2col patches for the stride-2 stem conv.
    Cheap in JAX: the raw input has only 3 channels."""
    x = jnp.transpose(x_nchw, (0, 2, 3, 1)).astype(jnp.float32)     # NHWC
    N, H, W, C = x.shape
    k, stride, pad = 3, 2, 1
    xp = jnp.pad(x, ((0, 0), (pad, pad), (pad, pad), (0, 0)))
    Ho = (H + 2 * pad - k) // stride + 1
    Wo = (W + 2 * pad - k) // stride + 1
    taps = []
    for i in range(k):
        for j in range(k):
            taps.append(xp[:, i:i + (Ho - 1) * stride + 1:stride,
                              j:j + (Wo - 1) * stride + 1:stride, :])
    p = jnp.stack(taps, axis=3)                                     # (N,Ho,Wo,9,C)
    p = p.reshape(N, Ho * Wo, k * k * C)                            # tap-major, ch-minor
    p = jnp.pad(p, ((0, 0), (0, 0), (0, KK - k * k * C)))           # pad K -> 128
    return p.astype(jnp.bfloat16), Ho, Wo


# -------------------- forward pass --------------------
def diabetic_retinopathy_forward(params, x_nchw):
    patches, Ho, Wo = stem_patches(x_nchw)
    N, HW, _ = patches.shape
    w_stack, wdw, aff = pack_params(params)

    out = pl.pallas_call(
        functools.partial(fused_mbconv_kernel, HO=Ho, WO=Wo),
        out_shape=jax.ShapeDtypeStruct((N, 1, CP), jnp.float32),
        grid_spec=pltpu.PrefetchScalarGridSpec(
            num_scalar_prefetch=0,
            grid=(N,),
            in_specs=[
                pl.BlockSpec((1, HW, KK), lambda n: (n, 0, 0)),   # per-image patches (streamed)
                pl.BlockSpec((8, CP, CP), lambda n: (0, 0, 0)),   # packed matmul weights (resident)
                pl.BlockSpec((9, CP), lambda n: (0, 0)),          # depthwise taps (resident)
                pl.BlockSpec((N_AFF, CP), lambda n: (0, 0)),      # folded BN scales/shifts + biases
            ],
            out_specs=pl.BlockSpec((1, 1, CP), lambda n: (n, 0, 0)),
            scratch_shapes=[pltpu.VMEM((Ho + 2, Wo + 2, CP), jnp.float32)],  # dw halo
        ),
        compiler_params=pltpu.CompilerParams(
            dimension_semantics=("parallel",),      # shard images across TCs on v7x
        ),
    )(patches, w_stack, wdw, aff)

    return out.reshape(N, CP)[:, :NUM_CLASSES]


# -------------------- parameter init --------------------
def init_params(key):
    keys = iter(jax.random.split(key, 64))

    def nrm(shape, s=0.05):
        return (s * jax.random.normal(next(keys), shape)).astype(jnp.float32)

    def bn(c):
        return dict(
            gamma=(1.0 + 0.1 * jax.random.normal(next(keys), (c,))).astype(jnp.float32),
            beta=(0.1 * jax.random.normal(next(keys), (c,))).astype(jnp.float32),
            mean=(0.05 * jax.random.normal(next(keys), (c,))).astype(jnp.float32),
            var=(1.0 + 0.1 * jnp.abs(jax.random.normal(next(keys), (c,)))).astype(jnp.float32),
        )

    return dict(
        stem_w=nrm((C_STEM, C_IN, 3, 3)), stem_bn=bn(C_STEM),
        exp_w=nrm((C_EXP, C_STEM, 1, 1)), exp_bn=bn(C_EXP),
        dw_w=nrm((C_EXP, 1, 3, 3)), dw_bn=bn(C_EXP),
        se_w1=nrm((C_SE, C_EXP, 1, 1)), se_b1=nrm((C_SE,)),
        se_w2=nrm((C_EXP, C_SE, 1, 1)), se_b2=nrm((C_EXP,)),
        proj_w=nrm((C_STEM, C_EXP, 1, 1)), proj_bn=bn(C_STEM),
        head_w=nrm((NUM_FEATURES, C_STEM, 1, 1)), head_bn=bn(NUM_FEATURES),
        lin1_w=nrm((HIDDEN, NUM_FEATURES)), lin1_b=nrm((HIDDEN,)),
        lin2_w=nrm((NUM_CLASSES, HIDDEN)), lin2_b=nrm((NUM_CLASSES,)),
    )


# -------------------- run --------------------
if __name__ == "__main__":
    key = jax.random.PRNGKey(0)
    k_x, k_p = jax.random.split(key)
    x = jax.random.normal(k_x, (2, C_IN, 16, 16), dtype=jnp.float32)  # NCHW like PyTorch
    params = init_params(k_p)

    fwd = jax.jit(diabetic_retinopathy_forward)
    out = jax.block_until_ready(fwd(params, x))

    assert out.shape == (2, NUM_CLASSES), out.shape
    assert bool(jnp.all(jnp.isfinite(out)))
    print("KERNEL_OK")
</pallas_src>

<mosaic_0001>
module attributes {stable_mosaic.version = 11 : i64} {
  func.func @fused_mbconv_kernel(%arg0: i32, %arg1: memref<1x64x128xbf16, #tpu.memory_space<vmem>>, %arg2: memref<8x128x128xbf16, #tpu.memory_space<vmem>>, %arg3: memref<9x128xf32, #tpu.memory_space<vmem>>, %arg4: memref<16x128xf32, #tpu.memory_space<vmem>>, %arg5: memref<1x1x128xf32, #tpu.memory_space<vmem>>, %arg6: memref<10x10x128xf32, #tpu.memory_space<vmem>>) attributes {dimension_semantics = [#tpu.dimension_semantics<parallel>], iteration_bounds = array<i64: 2>, scalar_prefetch = 0 : i64, scratch_operands = 1 : i64, tpu.core_type = #tpu.core_type<tc>, window_params = [{transform_indices = @transform_0, window_bounds = array<i64: 1, 64, 128>}, {pipeline_mode = #tpu.pipeline_mode<synchronous>, transform_indices = @transform_1, window_bounds = array<i64: 8, 128, 128>}, {pipeline_mode = #tpu.pipeline_mode<synchronous>, transform_indices = @transform_2, window_bounds = array<i64: 9, 128>}, {pipeline_mode = #tpu.pipeline_mode<synchronous>, transform_indices = @transform_3, window_bounds = array<i64: 16, 128>}, {transform_indices = @transform_4, window_bounds = array<i64: 1, 1, 128>}]} {
    %c0 = arith.constant 0 : index
    %c0_0 = arith.constant 0 : index
    %0 = vector.load %arg4[%c0, %c0_0] : memref<16x128xf32, #tpu.memory_space<vmem>>, vector<16x128xf32>
    %c0_1 = arith.constant 0 : index
    %c0_2 = arith.constant 0 : index
    %1 = vector.load %arg3[%c0_1, %c0_2] : memref<9x128xf32, #tpu.memory_space<vmem>>, vector<9x128xf32>
    %c0_3 = arith.constant 0 : index
    %c0_4 = arith.constant 0 : index
    %c0_5 = arith.constant 0 : index
    %2 = vector.load %arg1[%c0_3, %c0_4, %c0_5] : memref<1x64x128xbf16, #tpu.memory_space<vmem>>, vector<1x64x128xbf16>
    %3 = vector.shape_cast %2 : vector<1x64x128xbf16> to vector<64x128xbf16>
    %c0_6 = arith.constant 0 : index
    %c0_7 = arith.constant 0 : index
    %c0_8 = arith.constant 0 : index
    %4 = vector.load %arg2[%c0_6, %c0_7, %c0_8] : memref<8x128x128xbf16, #tpu.memory_space<vmem>>, vector<1x128x128xbf16>
    %5 = vector.shape_cast %4 : vector<1x128x128xbf16> to vector<128x128xbf16>
    %cst = arith.constant dense<0.000000e+00> : vector<64x128xf32>
    %6 = tpu.matmul %3, %5, %cst {dimension_numbers = #tpu.dot_dimension_numbers<[1], [0], [0], [1], [0, 0, 1, 1], [], []>} : vector<64x128xbf16>, vector<128x128xbf16>, vector<64x128xf32> -> vector<64x128xf32>
    %7 = vector.extract_strided_slice %0 {offsets = [0, 0], sizes = [1, 128], strides = [1, 1]} : vector<16x128xf32> to vector<1x128xf32>
    %8 = vector.broadcast %7 : vector<1x128xf32> to vector<64x128xf32>
    %9 = arith.mulf %6, %8 : vector<64x128xf32>
    %10 = vector.extract_strided_slice %0 {offsets = [1, 0], sizes = [1, 128], strides = [1, 1]} : vector<16x128xf32> to vector<1x128xf32>
    %11 = vector.broadcast %10 : vector<1x128xf32> to vector<64x128xf32>
    %12 = arith.addf %9, %11 : vector<64x128xf32>
    %13 = arith.negf %12 : vector<64x128xf32>
    %14 = math.exp %13 : vector<64x128xf32>
    %cst_9 = arith.constant 1.000000e+00 : f32
    %15 = vector.broadcast %cst_9 : f32 to vector<64x128xf32>
    %16 = arith.addf %15, %14 : vector<64x128xf32>
    %17 = arith.divf %15, %16 : vector<64x128xf32>
    %18 = arith.mulf %12, %17 : vector<64x128xf32>
    %19 = arith.truncf %18 : vector<64x128xf32> to vector<64x128xbf16>
    %c1 = arith.constant 1 : index
    %c0_10 = arith.constant 0 : index
    %c0_11 = arith.constant 0 : index
    %20 = vector.load %arg2[%c1, %c0_10, %c0_11] : memref<8x128x128xbf16, #tpu.memory_space<vmem>>, vector<1x128x128xbf16>
    %21 = vector.shape_cast %20 : vector<1x128x128xbf16> to vector<128x128xbf16>
    %cst_12 = arith.constant dense<0.000000e+00> : vector<64x128xf32>
    %22 = tpu.matmul %19, %21, %cst_12 {dimension_numbers = #tpu.dot_dimension_numbers<[1], [0], [0], [1], [0, 0, 1, 1], [], []>} : vector<64x128xbf16>, vector<128x128xbf16>, vector<64x128xf32> -> vector<64x128xf32>
    %23 = vector.extract_strided_slice %0 {offsets = [2, 0], sizes = [1, 128], strides = [1, 1]} : vector<16x128xf32> to vector<1x128xf32>
    %24 = vector.broadcast %23 : vector<1x128xf32> to vector<64x128xf32>
    %25 = arith.mulf %22, %24 : vector<64x128xf32>
    %26 = vector.extract_strided_slice %0 {offsets = [3, 0], sizes = [1, 128], strides = [1, 1]} : vector<16x128xf32> to vector<1x128xf32>
    %27 = vector.broadcast %26 : vector<1x128xf32> to vector<64x128xf32>
    %28 = arith.addf %25, %27 : vector<64x128xf32>
    %29 = arith.negf %28 : vector<64x128xf32>
    %30 = math.exp %29 : vector<64x128xf32>
    %cst_13 = arith.constant 1.000000e+00 : f32
    %31 = vector.broadcast %cst_13 : f32 to vector<64x128xf32>
    %32 = arith.addf %31, %30 : vector<64x128xf32>
    %33 = arith.divf %31, %32 : vector<64x128xf32>
    %34 = arith.mulf %28, %33 : vector<64x128xf32>
    %cst_14 = arith.constant 0.000000e+00 : f32
    %35 = vector.broadcast %cst_14 : f32 to vector<10x10x128xf32>
    %c0_15 = arith.constant 0 : index
    %c0_16 = arith.constant 0 : index
    %c0_17 = arith.constant 0 : index
    %36 = vector.load %arg6[%c0_15, %c0_16, %c0_17] : memref<10x10x128xf32, #tpu.memory_space<vmem>>, vector<10x10x128xf32>
    tpu.vector_store %arg6[%c0_15, %c0_16, %c0_17], %35 {strides = array<i32>} : memref<10x10x128xf32, #tpu.memory_space<vmem>>, vector<10x10x128xf32>,
    %37 = vector.shape_cast %34 : vector<64x128xf32> to vector<8x8x128xf32>
    %c1_18 = arith.constant 1 : index
    %c1_19 = arith.constant 1 : index
    %c0_20 = arith.constant 0 : index
    %38 = vector.load %arg6[%c1_18, %c1_19, %c0_20] : memref<10x10x128xf32, #tpu.memory_space<vmem>>, vector<8x8x128xf32>
    tpu.vector_store %arg6[%c1_18, %c1_19, %c0_20], %37 {strides = array<i32>} : memref<10x10x128xf32, #tpu.memory_space<vmem>>, vector<8x8x128xf32>,
    %cst_21 = arith.constant 0.000000e+00 : f32
    %39 = vector.broadcast %cst_21 : f32 to vector<8x8x128xf32>
    %c0_22 = arith.constant 0 : index
    %c0_23 = arith.constant 0 : index
    %c0_24 = arith.constant 0 : index
    %40 = vector.load %arg6[%c0_22, %c0_23, %c0_24] : memref<10x10x128xf32, #tpu.memory_space<vmem>>, vector<8x8x128xf32>
    %41 = vector.extract_strided_slice %1 {offsets = [0, 0], sizes = [1, 128], strides = [1, 1]} : vector<9x128xf32> to vector<1x128xf32>
    %42 = vector.shape_cast %41 : vector<1x128xf32> to vector<1x1x128xf32>
    %43 = vector.broadcast %42 : vector<1x1x128xf32> to vector<8x8x128xf32>
    %44 = arith.mulf %40, %43 : vector<8x8x128xf32>
    %45 = arith.addf %39, %44 : vector<8x8x128xf32>
    %c0_25 = arith.constant 0 : index
    %c1_26 = arith.constant 1 : index
    %c0_27 = arith.constant 0 : index
    %46 = vector.load %arg6[%c0_25, %c1_26, %c0_27] : memref<10x10x128xf32, #tpu.memory_space<vmem>>, vector<8x8x128xf32>
    %47 = vector.extract_strided_slice %1 {offsets = [1, 0], sizes = [1, 128], strides = [1, 1]} : vector<9x128xf32> to vector<1x128xf32>
    %48 = vector.shape_cast %47 : vector<1x128xf32> to vector<1x1x128xf32>
    %49 = vector.broadcast %48 : vector<1x1x128xf32> to vector<8x8x128xf32>
    %50 = arith.mulf %46, %49 : vector<8x8x128xf32>
    %51 = arith.addf %45, %50 : vector<8x8x128xf32>
    %c0_28 = arith.constant 0 : index
    %c2 = arith.constant 2 : index
    %c0_29 = arith.constant 0 : index
    %52 = vector.load %arg6[%c0_28, %c2, %c0_29] : memref<10x10x128xf32, #tpu.memory_space<vmem>>, vector<8x8x128xf32>
    %53 = vector.extract_strided_slice %1 {offsets = [2, 0], sizes = [1, 128], strides = [1, 1]} : vector<9x128xf32> to vector<1x128xf32>
    %54 = vector.shape_cast %53 : vector<1x128xf32> to vector<1x1x128xf32>
    %55 = vector.broadcast %54 : vector<1x1x128xf32> to vector<8x8x128xf32>
    %56 = arith.mulf %52, %55 : vector<8x8x128xf32>
    %57 = arith.addf %51, %56 : vector<8x8x128xf32>
    %c1_30 = arith.constant 1 : index
    %c0_31 = arith.constant 0 : index
    %c0_32 = arith.constant 0 : index
    %58 = vector.load %arg6[%c1_30, %c0_31, %c0_32] : memref<10x10x128xf32, #tpu.memory_space<vmem>>, vector<8x8x128xf32>
    %59 = vector.extract_strided_slice %1 {offsets = [3, 0], sizes = [1, 128], strides = [1, 1]} : vector<9x128xf32> to vector<1x128xf32>
    %60 = vector.shape_cast %59 : vector<1x128xf32> to vector<1x1x128xf32>
    %61 = vector.broadcast %60 : vector<1x1x128xf32> to vector<8x8x128xf32>
    %62 = arith.mulf %58, %61 : vector<8x8x128xf32>
    %63 = arith.addf %57, %62 : vector<8x8x128xf32>
    %c1_33 = arith.constant 1 : index
    %c1_34 = arith.constant 1 : index
    %c0_35 = arith.constant 0 : index
    %64 = vector.load %arg6[%c1_33, %c1_34, %c0_35] : memref<10x10x128xf32, #tpu.memory_space<vmem>>, vector<8x8x128xf32>
    %65 = vector.extract_strided_slice %1 {offsets = [4, 0], sizes = [1, 128], strides = [1, 1]} : vector<9x128xf32> to vector<1x128xf32>
    %66 = vector.shape_cast %65 : vector<1x128xf32> to vector<1x1x128xf32>
    %67 = vector.broadcast %66 : vector<1x1x128xf32> to vector<8x8x128xf32>
    %68 = arith.mulf %64, %67 : vector<8x8x128xf32>
    %69 = arith.addf %63, %68 : vector<8x8x128xf32>
    %c1_36 = arith.constant 1 : index
    %c2_37 = arith.constant 2 : index
    %c0_38 = arith.constant 0 : index
    %70 = vector.load %arg6[%c1_36, %c2_37, %c0_38] : memref<10x10x128xf32, #tpu.memory_space<vmem>>, vector<8x8x128xf32>
    %71 = vector.extract_strided_slice %1 {offsets = [5, 0], sizes = [1, 128], strides = [1, 1]} : vector<9x128xf32> to vector<1x128xf32>
    %72 = vector.shape_cast %71 : vector<1x128xf32> to vector<1x1x128xf32>
    %73 = vector.broadcast %72 : vector<1x1x128xf32> to vector<8x8x128xf32>
    %74 = arith.mulf %70, %73 : vector<8x8x128xf32>
    %75 = arith.addf %69, %74 : vector<8x8x128xf32>
    %c2_39 = arith.constant 2 : index
    %c0_40 = arith.constant 0 : index
    %c0_41 = arith.constant 0 : index
    %76 = vector.load %arg6[%c2_39, %c0_40, %c0_41] : memref<10x10x128xf32, #tpu.memory_space<vmem>>, vector<8x8x128xf32>
    %77 = vector.extract_strided_slice %1 {offsets = [6, 0], sizes = [1, 128], strides = [1, 1]} : vector<9x128xf32> to vector<1x128xf32>
    %78 = vector.shape_cast %77 : vector<1x128xf32> to vector<1x1x128xf32>
    %79 = vector.broadcast %78 : vector<1x1x128xf32> to vector<8x8x128xf32>
    %80 = arith.mulf %76, %79 : vector<8x8x128xf32>
    %81 = arith.addf %75, %80 : vector<8x8x128xf32>
    %c2_42 = arith.constant 2 : index
    %c1_43 = arith.constant 1 : index
    %c0_44 = arith.constant 0 : index
    %82 = vector.load %arg6[%c2_42, %c1_43, %c0_44] : memref<10x10x128xf32, #tpu.memory_space<vmem>>, vector<8x8x128xf32>
    %83 = vector.extract_strided_slice %1 {offsets = [7, 0], sizes = [1, 128], strides = [1, 1]} : vector<9x128xf32> to vector<1x128xf32>
    %84 = vector.shape_cast %83 : vector<1x128xf32> to vector<1x1x128xf32>
    %85 = vector.broadcast %84 : vector<1x1x128xf32> to vector<8x8x128xf32>
    %86 = arith.mulf %82, %85 : vector<8x8x128xf32>
    %87 = arith.addf %81, %86 : vector<8x8x128xf32>
    %c2_45 = arith.constant 2 : index
    %c2_46 = arith.constant 2 : index
    %c0_47 = arith.constant 0 : index
    %88 = vector.load %arg6[%c2_45, %c2_46, %c0_47] : memref<10x10x128xf32, #tpu.memory_space<vmem>>, vector<8x8x128xf32>
    %89 = vector.extract_strided_slice %1 {offsets = [8, 0], sizes = [1, 128], strides = [1, 1]} : vector<9x128xf32> to vector<1x128xf32>
    %90 = vector.shape_cast %89 : vector<1x128xf32> to vector<1x1x128xf32>
    %91 = vector.broadcast %90 : vector<1x1x128xf32> to vector<8x8x128xf32>
    %92 = arith.mulf %88, %91 : vector<8x8x128xf32>
    %93 = arith.addf %87, %92 : vector<8x8x128xf32>
    %94 = vector.shape_cast %93 : vector<8x8x128xf32> to vector<64x128xf32>
    %95 = vector.extract_strided_slice %0 {offsets = [4, 0], sizes = [1, 128], strides = [1, 1]} : vector<16x128xf32> to vector<1x128xf32>
    %96 = vector.broadcast %95 : vector<1x128xf32> to vector<64x128xf32>
    %97 = arith.mulf %94, %96 : vector<64x128xf32>
    %98 = vector.extract_strided_slice %0 {offsets = [5, 0], sizes = [1, 128], strides = [1, 1]} : vector<16x128xf32> to vector<1x128xf32>
    %99 = vector.broadcast %98 : vector<1x128xf32> to vector<64x128xf32>
    %100 = arith.addf %97, %99 : vector<64x128xf32>
    %101 = arith.negf %100 : vector<64x128xf32>
    %102 = math.exp %101 : vector<64x128xf32>
    %cst_48 = arith.constant 1.000000e+00 : f32
    %103 = vector.broadcast %cst_48 : f32 to vector<64x128xf32>
    %104 = arith.addf %103, %102 : vector<64x128xf32>
    %105 = arith.divf %103, %104 : vector<64x128xf32>
    %106 = arith.mulf %100, %105 : vector<64x128xf32>
    %cst_49 = arith.constant dense<0.000000e+00> : vector<128xf32>
    %107 = vector.multi_reduction <add>, %106, %cst_49 [0] : vector<64x128xf32> to vector<128xf32>
    %108 = vector.shape_cast %107 : vector<128xf32> to vector<1x128xf32>
    %cst_50 = arith.constant 6.400000e+01 : f32
    %109 = vector.broadcast %cst_50 : f32 to vector<1x128xf32>
    %110 = arith.divf %108, %109 : vector<1x128xf32>
    %111 = arith.truncf %110 : vector<1x128xf32> to vector<1x128xbf16>
    %c2_51 = arith.constant 2 : index
    %c0_52 = arith.constant 0 : index
    %c0_53 = arith.constant 0 : index
    %112 = vector.load %arg2[%c2_51, %c0_52, %c0_53] : memref<8x128x128xbf16, #tpu.memory_space<vmem>>, vector<1x128x128xbf16>
    %113 = vector.shape_cast %112 : vector<1x128x128xbf16> to vector<128x128xbf16>
    %cst_54 = arith.constant dense<0.000000e+00> : vector<1x128xf32>
    %114 = tpu.matmul %111, %113, %cst_54 {dimension_numbers = #tpu.dot_dimension_numbers<[1], [0], [0], [1], [0, 0, 1, 1], [], []>} : vector<1x128xbf16>, vector<128x128xbf16>, vector<1x128xf32> -> vector<1x128xf32>
    %115 = vector.extract_strided_slice %0 {offsets = [6, 0], sizes = [1, 128], strides = [1, 1]} : vector<16x128xf32> to vector<1x128xf32>
    %116 = arith.addf %114, %115 : vector<1x128xf32>
    %117 = arith.negf %116 : vector<1x128xf32>
    %118 = math.exp %117 : vector<1x128xf32>
    %cst_55 = arith.constant 1.000000e+00 : f32
    %119 = vector.broadcast %cst_55 : f32 to vector<1x128xf32>
    %120 = arith.addf %119, %118 : vector<1x128xf32>
    %121 = arith.divf %119, %120 : vector<1x128xf32>
    %122 = arith.mulf %116, %121 : vector<1x128xf32>
    %123 = arith.truncf %122 : vector<1x128xf32> to vector<1x128xbf16>
    %c3 = arith.constant 3 : index
    %c0_56 = arith.constant 0 : index
    %c0_57 = arith.constant 0 : index
    %124 = vector.load %arg2[%c3, %c0_56, %c0_57] : memref<8x128x128xbf16, #tpu.memory_space<vmem>>, vector<1x128x128xbf16>
    %125 = vector.shape_cast %124 : vector<1x128x128xbf16> to vector<128x128xbf16>
    %cst_58 = arith.constant dense<0.000000e+00> : vector<1x128xf32>
    %126 = tpu.matmul %123, %125, %cst_58 {dimension_numbers = #tpu.dot_dimension_numbers<[1], [0], [0], [1], [0, 0, 1, 1], [], []>} : vector<1x128xbf16>, vector<128x128xbf16>, vector<1x128xf32> -> vector<1x128xf32>
    %127 = vector.extract_strided_slice %0 {offsets = [7, 0], sizes = [1, 128], strides = [1, 1]} : vector<16x128xf32> to vector<1x128xf32>
    %128 = arith.addf %126, %127 : vector<1x128xf32>
    %129 = arith.negf %128 : vector<1x128xf32>
    %130 = math.exp %129 : vector<1x128xf32>
    %cst_59 = arith.constant 1.000000e+00 : f32
    %131 = vector.broadcast %cst_59 : f32 to vector<1x128xf32>
    %132 = arith.addf %131, %130 : vector<1x128xf32>
    %133 = arith.divf %131, %132 : vector<1x128xf32>
    %134 = vector.broadcast %133 : vector<1x128xf32> to vector<64x128xf32>
    %135 = arith.mulf %106, %134 : vector<64x128xf32>
    %136 = arith.truncf %135 : vector<64x128xf32> to vector<64x128xbf16>
    %c4 = arith.constant 4 : index
    %c0_60 = arith.constant 0 : index
    %c0_61 = arith.constant 0 : index
    %137 = vector.load %arg2[%c4, %c0_60, %c0_61] : memref<8x128x128xbf16, #tpu.memory_space<vmem>>, vector<1x128x128xbf16>
    %138 = vector.shape_cast %137 : vector<1x128x128xbf16> to vector<128x128xbf16>
    %cst_62 = arith.constant dense<0.000000e+00> : vector<64x128xf32>
    %139 = tpu.matmul %136, %138, %cst_62 {dimension_numbers = #tpu.dot_dimension_numbers<[1], [0], [0], [1], [0, 0, 1, 1], [], []>} : vector<64x128xbf16>, vector<128x128xbf16>, vector<64x128xf32> -> vector<64x128xf32>
    %140 = vector.extract_strided_slice %0 {offsets = [8, 0], sizes = [1, 128], strides = [1, 1]} : vector<16x128xf32> to vector<1x128xf32>
    %141 = vector.broadcast %140 : vector<1x128xf32> to vector<64x128xf32>
    %142 = arith.mulf %139, %141 : vector<64x128xf32>
    %143 = vector.extract_strided_slice %0 {offsets = [9, 0], sizes = [1, 128], strides = [1, 1]} : vector<16x128xf32> to vector<1x128xf32>
    %144 = vector.broadcast %143 : vector<1x128xf32> to vector<64x128xf32>
    %145 = arith.addf %142, %144 : vector<64x128xf32>
    %146 = arith.addf %145, %18 : vector<64x128xf32>
    %147 = arith.truncf %146 : vector<64x128xf32> to vector<64x128xbf16>
    %c5 = arith.constant 5 : index
    %c0_63 = arith.constant 0 : index
    %c0_64 = arith.constant 0 : index
    %148 = vector.load %arg2[%c5, %c0_63, %c0_64] : memref<8x128x128xbf16, #tpu.memory_space<vmem>>, vector<1x128x128xbf16>
    %149 = vector.shape_cast %148 : vector<1x128x128xbf16> to vector<128x128xbf16>
    %cst_65 = arith.constant dense<0.000000e+00> : vector<64x128xf32>
    %150 = tpu.matmul %147, %149, %cst_65 {dimension_numbers = #tpu.dot_dimension_numbers<[1], [0], [0], [1], [0, 0, 1, 1], [], []>} : vector<64x128xbf16>, vector<128x128xbf16>, vector<64x128xf32> -> vector<64x128xf32>
    %151 = vector.extract_strided_slice %0 {offsets = [10, 0], sizes = [1, 128], strides = [1, 1]} : vector<16x128xf32> to vector<1x128xf32>
    %152 = vector.broadcast %151 : vector<1x128xf32> to vector<64x128xf32>
    %153 = arith.mulf %150, %152 : vector<64x128xf32>
    %154 = vector.extract_strided_slice %0 {offsets = [11, 0], sizes = [1, 128], strides = [1, 1]} : vector<16x128xf32> to vector<1x128xf32>
    %155 = vector.broadcast %154 : vector<1x128xf32> to vector<64x128xf32>
    %156 = arith.addf %153, %155 : vector<64x128xf32>
    %157 = arith.negf %156 : vector<64x128xf32>
    %158 = math.exp %157 : vector<64x128xf32>
    %cst_66 = arith.constant 1.000000e+00 : f32
    %159 = vector.broadcast %cst_66 : f32 to vector<64x128xf32>
    %160 = arith.addf %159, %158 : vector<64x128xf32>
    %161 = arith.divf %159, %160 : vector<64x128xf32>
    %162 = arith.mulf %156, %161 : vector<64x128xf32>
    %cst_67 = arith.constant dense<0.000000e+00> : vector<128xf32>
    %163 = vector.multi_reduction <add>, %162, %cst_67 [0] : vector<64x128xf32> to vector<128xf32>
    %164 = vector.shape_cast %163 : vector<128xf32> to vector<1x128xf32>
    %cst_68 = arith.constant 6.400000e+01 : f32
    %165 = vector.broadcast %cst_68 : f32 to vector<1x128xf32>
    %166 = arith.divf %164, %165 : vector<1x128xf32>
    %167 = arith.truncf %166 : vector<1x128xf32> to vector<1x128xbf16>
    %c6 = arith.constant 6 : index
    %c0_69 = arith.constant 0 : index
    %c0_70 = arith.constant 0 : index
    %168 = vector.load %arg2[%c6, %c0_69, %c0_70] : memref<8x128x128xbf16, #tpu.memory_space<vmem>>, vector<1x128x128xbf16>
    %169 = vector.shape_cast %168 : vector<1x128x128xbf16> to vector<128x128xbf16>
    %cst_71 = arith.constant dense<0.000000e+00> : vector<1x128xf32>
    %170 = tpu.matmul %167, %169, %cst_71 {dimension_numbers = #tpu.dot_dimension_numbers<[1], [0], [0], [1], [0, 0, 1, 1], [], []>} : vector<1x128xbf16>, vector<128x128xbf16>, vector<1x128xf32> -> vector<1x128xf32>
    %171 = vector.extract_strided_slice %0 {offsets = [12, 0], sizes = [1, 128], strides = [1, 1]} : vector<16x128xf32> to vector<1x128xf32>
    %172 = arith.addf %170, %171 : vector<1x128xf32>
    %cst_72 = arith.constant 0.000000e+00 : f32
    %173 = vector.broadcast %cst_72 : f32 to vector<1x128xf32>
    %174 = arith.maximumf %172, %173 : vector<1x128xf32>
    %175 = arith.truncf %174 : vector<1x128xf32> to vector<1x128xbf16>
    %c7 = arith.constant 7 : index
    %c0_73 = arith.constant 0 : index
    %c0_74 = arith.constant 0 : index
    %176 = vector.load %arg2[%c7, %c0_73, %c0_74] : memref<8x128x128xbf16, #tpu.memory_space<vmem>>, vector<1x128x128xbf16>
    %177 = vector.shape_cast %176 : vector<1x128x128xbf16> to vector<128x128xbf16>
    %cst_75 = arith.constant dense<0.000000e+00> : vector<1x128xf32>
    %178 = tpu.matmul %175, %177, %cst_75 {dimension_numbers = #tpu.dot_dimension_numbers<[1], [0], [0], [1], [0, 0, 1, 1], [], []>} : vector<1x128xbf16>, vector<128x128xbf16>, vector<1x128xf32> -> vector<1x128xf32>
    %179 = vector.extract_strided_slice %0 {offsets = [13, 0], sizes = [1, 128], strides = [1, 1]} : vector<16x128xf32> to vector<1x128xf32>
    %180 = arith.addf %178, %179 : vector<1x128xf32>
    %c0_76 = arith.constant 0 : index
    %c0_77 = arith.constant 0 : index
    %c0_78 = arith.constant 0 : index
    %181 = vector.load %arg5[%c0_76, %c0_77, %c0_78] : memref<1x1x128xf32, #tpu.memory_space<vmem>>, vector<1x1x128xf32>
    %182 = vector.shape_cast %181 : vector<1x1x128xf32> to vector<1x128xf32>
    %183 = vector.shape_cast %180 : vector<1x128xf32> to vector<1x1x128xf32>
    tpu.vector_store %arg5[%c0_76, %c0_77, %c0_78], %183 {strides = array<i32>} : memref<1x1x128xf32, #tpu.memory_space<vmem>>, vector<1x1x128xf32>,
    return
  }
  func.func @transform_0(%arg0: i32) -> (i32, i32, i32) {
    %c0_i32 = arith.constant 0 : i32
    %c0_i32_0 = arith.constant 0 : i32
    %c0_i32_1 = arith.constant 0 : i32
    return %arg0, %c0_i32, %c0_i32_0 : i32, i32, i32
  }
  func.func @transform_1(%arg0: i32) -> (i32, i32, i32) {
    %c0_i32 = arith.constant 0 : i32
    %c0_i32_0 = arith.constant 0 : i32
    %c0_i32_1 = arith.constant 0 : i32
    %c0_i32_2 = arith.constant 0 : i32
    return %c0_i32, %c0_i32_0, %c0_i32_1 : i32, i32, i32
  }
  func.func @transform_2(%arg0: i32) -> (i32, i32) {
    %c0_i32 = arith.constant 0 : i32
    %c0_i32_0 = arith.constant 0 : i32
    %c0_i32_1 = arith.constant 0 : i32
    return %c0_i32, %c0_i32_0 : i32, i32
  }
  func.func @transform_3(%arg0: i32) -> (i32, i32) {
    %c0_i32 = arith.constant 0 : i32
    %c0_i32_0 = arith.constant 0 : i32
    %c0_i32_1 = arith.constant 0 : i32
    return %c0_i32, %c0_i32_0 : i32, i32
  }
  func.func @transform_4(%arg0: i32) -> (i32, i32, i32) {
    %c0_i32 = arith.constant 0 : i32
    %c0_i32_0 = arith.constant 0 : i32
    %c0_i32_1 = arith.constant 0 : i32
    return %arg0, %c0_i32, %c0_i32_0 : i32, i32, i32
  }
}

</mosaic_0001>

<llo_original>
// kernel: diabetic_retinopathy_forward.1
$region0: #{diabetic_retinopathy_forward.1}
  #allocation0 [shape = 'u32[]', space=smem, size = 0x4, offset = 0x4, fixed_abs, tag = 'smem constant byte address 0x4 - core index']
  #allocation1 [shape = 'u32[144,128]{1,0:T(1,128)}', space=vmem, size = 0x12000, scoped, tag = 'internal scratch']
  #allocation2 [shape = 'f32[10,10,128]{2,1,0:T(8,128)}', space=vmem, size = 0x14000, scoped, tag = 'scratch operand']
  %s0 = inlined_call_operand.vmem [shape: bf16[2,64,128], index: 0, kind: input, shape index: {}]
  %s1 = inlined_call_operand.vmem [shape: bf16[8,128,128], index: 1, kind: input, shape index: {}]
  %s2 = inlined_call_operand.vmem [shape: f32[9,128], index: 2, kind: input, shape index: {}]
  %s3 = inlined_call_operand.vmem [shape: f32[16,128], index: 3, kind: input, shape index: {}]
  %s4 = inlined_call_operand.hbm [shape: f32[2,1,128], index: 4, kind: output, shape index: {}]
  %s5 = sld [smem:[#allocation0]]
  $region49: #{diabetic_retinopathy_forward.1} parent=0
    _
  %s7 = ssub.s32 1, %s5
  %s8 = scalar_select 0, %s7, %s5
  $region1: #{diabetic_retinopathy_forward.1} parent=0
    #allocation3 [shape = 'u8[1024]{0}', space=vmem, size = 0x400, scoped, tag = 'output window, operand 0']
    #allocation4 [shape = 's32[2]{0}', space=sflag, size = 0x8, scoped, tag = 'scoped memory for diabetic_retinopathy_forward.1']
    %9 = vsyncpa [#allocation4], 0
    %s10 = scalar_lea.sflag [#allocation4], 1
    %11 = vsyncpa %s10, 0
    loop: start=0, step=1, limit=4
    $region2: #{diabetic_retinopathy_forward.1} parent=1 // loop_pre_header
      _
    $region3: #{diabetic_retinopathy_forward.1} parent=1 // loop_header
      %s13 = sphi 0, %s17
      %p14 = scmp.ge.s32.totalorder %s13, 4
      %s23 = sphi 0, %s25
      %s26 = sphi 0, %s23
      %s27 = sphi 0, %s26
      %s43 = sphi 0, %s27
      %s47 = sphi 0, %s47
      %s49 = sphi 0, %s47
      %s50 = sphi 0, %s49
      %s64 = sphi 0, %s50
      %s68 = sphi 0, %s68
      %s70 = sphi 0, %s68
      %s71 = sphi 0, %s70
      %s85 = sphi 0, %s71
      %s89 = sphi 0, %s89
      %s91 = sphi 0, %s89
      %s92 = sphi 0, %s91
      %s106 = sphi 0, %s92
      %s112 = sphi 0, %s114
      %s115 = sphi 0, %s112
      %s116 = sphi 0, %s115
      %s132 = sphi 0, %s116
    $region4: #{diabetic_retinopathy_forward.1} parent=1 // loop_header_branch
      %16 = sbr.rel (%p14) target = $region8
    $region5: #{diabetic_retinopathy_forward.1} parent=1 // loop_body
      %s18 = ssub.s32 %s13, 1
      %s19 = ssub.s32 %s13, 2
      %s20 = sadd.s32 %s13, 1
      %s21 = ssub.s32 %s13, %s20
      %p22 = scmp.eq.s32.totalorder %s21, 0
      %s24 = sadd.s32 %s23, 1
      %s25 = scalar_select %p22, %s23, %s24
      %p28 = pneg %p22
      %p29 = scmp.eq.s32.totalorder %s13, 1
      %p30 = por %p28, %p29
      %p31 = scmp.ne.s32.totalorder %s23, %s26
      %p32 = scmp.eq.s32.totalorder %s13, 0
      %p33 = por %p31, %p32
      %p34 = scmp.ne.s32.totalorder %s23, %s26
      %p35 = scmp.eq.s32.totalorder %s18, 1
      %p36 = por %p34, %p35
      %p37 = scmp.ne.s32.totalorder %s26, %s27
      %p38 = scmp.eq.s32.totalorder %s18, 0
      %p39 = por %p37, %p38
      %p40 = scmp.ne.s32.totalorder %s26, %s27
      %p41 = scmp.eq.s32.totalorder %s19, 1
      %p42 = por %p40, %p41
      %p44 = scmp.ne.s32.totalorder %s27, %s43
      %p45 = scmp.eq.s32.totalorder %s19, 0
      %p46 = por %p44, %p45
      %s48 = sadd.s32 %s47, 1
      %p51 = scmp.eq.s32.totalorder %s13, 1
      %p52 = scmp.ne.s32.totalorder %s47, %s49
      %p53 = scmp.eq.s32.totalorder %s13, 0
      %p54 = por %p52, %p53
      %p55 = scmp.ne.s32.totalorder %s47, %s49
      %p56 = scmp.eq.s32.totalorder %s18, 1
      %p57 = por %p55, %p56
      %p58 = scmp.ne.s32.totalorder %s49, %s50
      %p59 = scmp.eq.s32.totalorder %s18, 0
      %p60 = por %p58, %p59
      %p61 = scmp.ne.s32.totalorder %s49, %s50
      %p62 = scmp.eq.s32.totalorder %s19, 1
      %p63 = por %p61, %p62
      %p65 = scmp.ne.s32.totalorder %s50, %s64
      %p66 = scmp.eq.s32.totalorder %s19, 0
      %p67 = por %p65, %p66
      %s69 = sadd.s32 %s68, 1
      %p72 = scmp.eq.s32.totalorder %s13, 1
      %p73 = scmp.ne.s32.totalorder %s68, %s70
      %p74 = scmp.eq.s32.totalorder %s13, 0
      %p75 = por %p73, %p74
      %p76 = scmp.ne.s32.totalorder %s68, %s70
      %p77 = scmp.eq.s32.totalorder %s18, 1
      %p78 = por %p76, %p77
      %p79 = scmp.ne.s32.totalorder %s70, %s71
      %p80 = scmp.eq.s32.totalorder %s18, 0
      %p81 = por %p79, %p80
      %p82 = scmp.ne.s32.totalorder %s70, %s71
      %p83 = scmp.eq.s32.totalorder %s19, 1
      %p84 = por %p82, %p83
      %p86 = scmp.ne.s32.totalorder %s71, %s85
      %p87 = scmp.eq.s32.totalorder %s19, 0
      %p88 = por %p86, %p87
      %s90 = sadd.s32 %s89, 1
      %p93 = scmp.eq.s32.totalorder %s13, 1
      %p94 = scmp.ne.s32.totalorder %s89, %s91
      %p95 = scmp.eq.s32.totalorder %s13, 0
      %p96 = por %p94, %p95
      %p97 = scmp.ne.s32.totalorder %s89, %s91
      %p98 = scmp.eq.s32.totalorder %s18, 1
      %p99 = por %p97, %p98
      %p100 = scmp.ne.s32.totalorder %s91, %s92
      %p101 = scmp.eq.s32.totalorder %s18, 0
      %p102 = por %p100, %p101
      %p103 = scmp.ne.s32.totalorder %s91, %s92
      %p104 = scmp.eq.s32.totalorder %s19, 1
      %p105 = por %p103, %p104
      %p107 = scmp.ne.s32.totalorder %s92, %s106
      %p108 = scmp.eq.s32.totalorder %s19, 0
      %p109 = por %p107, %p108
      %s110 = ssub.s32 %s13, %s20
      %p111 = scmp.eq.s32.totalorder %s110, 0
      %s113 = sadd.s32 %s112, 1
      %s114 = scalar_select %p111, %s112, %s113
      %p117 = pneg %p111
      %p118 = scmp.eq.s32.totalorder %s13, 1
      %p119 = por %p117, %p118
      %p120 = scmp.ne.s32.totalorder %s112, %s115
      %p121 = scmp.eq.s32.totalorder %s13, 0
      %p122 = por %p120, %p121
      %p123 = scmp.ne.s32.totalorder %s112, %s115
      %p124 = scmp.eq.s32.totalorder %s18, 1
      %p125 = por %p123, %p124
      %p126 = scmp.ne.s32.totalorder %s115, %s116
      %p127 = scmp.eq.s32.totalorder %s18, 0
      %p128 = por %p126, %p127
      %p129 = scmp.ne.s32.totalorder %s115, %s116
      %p130 = scmp.eq.s32.totalorder %s19, 1
      %p131 = por %p129, %p130
      %p133 = scmp.ne.s32.totalorder %s116, %s132
      %p134 = scmp.eq.s32.totalorder %s19, 0
      %p135 = por %p133, %p134
      %p136 = scmp.le.s32.totalorder 1, %s13
      %p137 = scmp.lt.s32.totalorder %s13, 3
      %p138 = pnand %p136, %p137
      %p139 = pneg %p138
      // Predicated region
      $region9: #{diabetic_retinopathy_forward.1} parent=5 // pred_check
        _
      $region10: #{diabetic_retinopathy_forward.1} parent=5 // pred_check_branch
        %141 = sbr.rel (%p138) target = $region12
      $region11: #{diabetic_retinopathy_forward.1} parent=5 // pred_region
        %s142 = ssub.s32 %s13, 1
        // Predicated region
        $region13: #{diabetic_retinopathy_forward.1} parent=11 // pred_check
          %p143 = pneg %p60
        $region14: #{diabetic_retinopathy_forward.1} parent=11 // pred_check_branch
          %145 = sbr.rel (%p143) target = $region16
        $region15: #{diabetic_retinopathy_forward.1} parent=11 // pred_region
          _
        $region16: #{diabetic_retinopathy_forward.1} parent=11 // pred_fallthru
          _
        // Predicated region
        $region17: #{diabetic_retinopathy_forward.1} parent=11 // pred_check
          %p146 = pneg %p81
        $region18: #{diabetic_retinopathy_forward.1} parent=11 // pred_check_branch
          %148 = sbr.rel (%p146) target = $region20
        $region19: #{diabetic_retinopathy_forward.1} parent=11 // pred_region
          _
        $region20: #{diabetic_retinopathy_forward.1} parent=11 // pred_fallthru
          _
        // Predicated region
        $region21: #{diabetic_retinopathy_forward.1} parent=11 // pred_check
          %p149 = pneg %p102
        $region22: #{diabetic_retinopathy_forward.1} parent=11 // pred_check_branch
          %151 = sbr.rel (%p149) target = $region24
        $region23: #{diabetic_retinopathy_forward.1} parent=11 // pred_region
          _
        $region24: #{diabetic_retinopathy_forward.1} parent=11 // pred_fallthru
          _
      $region12: #{diabetic_retinopathy_forward.1} parent=5 // pred_fallthru
        _
      %p152 = scmp.lt.s32.totalorder %s13, 2
      // Predicated region
      $region25: #{diabetic_retinopathy_forward.1} parent=5 // pred_check
        %p153 = pneg %p152
      $region26: #{diabetic_retinopathy_forward.1} parent=5 // pred_check_branch
        %155 = sbr.rel (%p153) target = $region28
      $region27: #{diabetic_retinopathy_forward.1} parent=5 // pred_region
        // Predicated region
        $region29: #{diabetic_retinopathy_forward.1} parent=27 // pred_check
          %p156 = pneg %p33
        $region30: #{diabetic_retinopathy_forward.1} parent=27 // pred_check_branch
          %158 = sbr.rel (%p156) target = $region32
        $region31: #{diabetic_retinopathy_forward.1} parent=27 // pred_region
          %p159 = scmp.lt.s32.totalorder %s13, 1
          %s160 = scalar_select %p159, %s13, 1
          %s161 = smul.addr %s160, 8
          %s162 = smul.addr %s161, 4
          %s163 = scalar_lea.vmem %s0, %s162
        $region32: #{diabetic_retinopathy_forward.1} parent=27 // pred_fallthru
          _
      $region28: #{diabetic_retinopathy_forward.1} parent=5 // pred_fallthru
        _
      %p164 = scmp.le.s32.totalorder 1, %s13
      %p165 = scmp.lt.s32.totalorder %s13, 3
      %p166 = pnand %p164, %p165
      %p167 = pneg %p166
      // Predicated region
      $region33: #{diabetic_retinopathy_forward.1} parent=5 // pred_check
        _
      $region34: #{diabetic_retinopathy_forward.1} parent=5 // pred_check_branch
        %169 = sbr.rel (%p166) target = $region36
      $region35: #{diabetic_retinopathy_forward.1} parent=5 // pred_region
        %s170 = ssub.s32 %s13, 1
        %p171 = scmp.lt.s32.totalorder %s18, 1
        %s172 = scalar_select %p171, %s18, 1
        %s173 = smul.addr %s172, 8
        %s174 = smul.addr %s173, 4
        %s175 = scalar_lea.vmem %s0, %s174
        %p176 = pneg %p39
        %p177 = pneg %p36
        %p178 = pneg %p60
        %p179 = pneg %p57
        %p180 = pneg %p81
        %p181 = pneg %p78
        %p182 = pneg %p102
        %p183 = pneg %p99
        %p184 = pneg %p128
        %p185 = pneg %p125
        %s186 = sand.u32 %s115, 1
        %s187 = scalar_lea.sflag [#allocation4], %s186
        %s188 = sand.u32 %s115, 1
        %s189 = scalar_lea.vmem [#allocation3], %s188
        %p190 = scmp.lt.s32.totalorder %s18, 1
        %s191 = scalar_select %p190, %s18, 1
        %s192 = smul.addr %s191, 8
        %s193 = smul.addr %s192, 4
        %s194 = scalar_lea.vmem %s0, %s193
        %v196 = vld [vmem:[%s3] sm:$0xff]
        %v197 = vld [vmem:[%s3 + $0x8] sm:$0xff]
        %v198 = vld [vmem:[%s2] sm:$0xff]
        %v199 = vld [vmem:[%s2 + $0x8] sm:$0x1]
        %v200 = vld [vmem:[%s194] sm:$0xf]
        %v201 = vld [vmem:[%s194 + $0x4] sm:$0xf]
        %v202 = vld [vmem:[%s194 + $0x8] sm:$0xf]
        %v203 = vld [vmem:[%s194 + $0xc] sm:$0xf]
        %v204 = vld [vmem:[%s194 + $0x10] sm:$0xf]
        %v205 = vld [vmem:[%s194 + $0x14] sm:$0xf]
        %v206 = vld [vmem:[%s194 + $0x18] sm:$0xf]
        %v207 = vld [vmem:[%s194 + $0x1c] sm:$0xf]
        %v208 = vld [vmem:[%s1] sm:$0xf]
        %v209 = vld [vmem:[%s1 + $0x4] sm:$0xf]
        %v210 = vld [vmem:[%s1 + $0x8] sm:$0xf]
        %v211 = vld [vmem:[%s1 + $0xc] sm:$0xf]
        %v212 = vld [vmem:[%s1 + $0x10] sm:$0xf]
        %v213 = vld [vmem:[%s1 + $0x14] sm:$0xf]
        %v214 = vld [vmem:[%s1 + $0x18] sm:$0xf]
        %v215 = vld [vmem:[%s1 + $0x1c] sm:$0xf]
        %v216 = vld [vmem:[%s1 + $0x20] sm:$0xf]
        %v217 = vld [vmem:[%s1 + $0x24] sm:$0xf]
        %v218 = vld [vmem:[%s1 + $0x28] sm:$0xf]
        %v219 = vld [vmem:[%s1 + $0x2c] sm:$0xf]
        %v220 = vld [vmem:[%s1 + $0x30] sm:$0xf]
        %v221 = vld [vmem:[%s1 + $0x34] sm:$0xf]
        %v222 = vld [vmem:[%s1 + $0x38] sm:$0xf]
        %v223 = vld [vmem:[%s1 + $0x3c] sm:$0xf]
        %v232 = vunpack.c.l.b16 %v200
        %v233 = vunpack.c.l.b16 %v201
        %v234 = vunpack.c.l.b16 %v202
        %v235 = vunpack.c.l.b16 %v203
        %v236 = vunpack.c.l.b16 %v204
        %v237 = vunpack.c.l.b16 %v205
        %v238 = vunpack.c.l.b16 %v206
        %v239 = vunpack.c.l.b16 %v207
        %v240 = vpack.c.b16 %v233, %v232
        %v241 = vpack.c.b16 %v235, %v234
        %v242 = vpack.c.b16 %v237, %v236
        %v243 = vpack.c.b16 %v239, %v238
        %v264 = vunpack.c.l.b16 %v208
        %v265 = vunpack.c.l.b16 %v209
        %v266 = vunpack.c.l.b16 %v210
        %v267 = vunpack.c.l.b16 %v211
        %v268 = vunpack.c.l.b16 %v212
        %v269 = vunpack.c.l.b16 %v213
        %v270 = vunpack.c.l.b16 %v214
        %v271 = vunpack.c.l.b16 %v215
        %v272 = vunpack.c.l.b16 %v216
        %v273 = vunpack.c.l.b16 %v217
        %v274 = vunpack.c.l.b16 %v218
        %v275 = vunpack.c.l.b16 %v219
        %v276 = vunpack.c.l.b16 %v220
        %v277 = vunpack.c.l.b16 %v221
        %v278 = vunpack.c.l.b16 %v222
        %v279 = vunpack.c.l.b16 %v223
        %v280 = vpack.c.b16 %v265, %v264
        %v281 = vpack.c.b16 %v267, %v266
        %v282 = vpack.c.b16 %v269, %v268
        %v283 = vpack.c.b16 %v271, %v270
        %v284 = vpack.c.b16 %v273, %v272
        %v285 = vpack.c.b16 %v275, %v274
        %v286 = vpack.c.b16 %v277, %v276
        %v287 = vpack.c.b16 %v279, %v278
        %296 = vmatprep.subr.bf16.mxu0 0
        %297 = vmatpush1.bf16.msra.mxu0 %v287
        %298 = vmatprep.subr.bf16.mxu0 0
        %299 = vmatpush1.bf16.msra.mxu0 %v286
        %300 = vmatprep.subr.bf16.mxu0 0
        %301 = vmatpush1.bf16.msra.mxu0 %v285
        %302 = vmatprep.subr.bf16.mxu0 0
        %303 = vmatpush1.bf16.msra.mxu0 %v284
        %304 = vmatprep.subr.bf16.mxu0 0
        %305 = vmatpush1.bf16.msra.mxu0 %v283
        %306 = vmatprep.subr.bf16.mxu0 0
        %307 = vmatpush1.bf16.msra.mxu0 %v282
        %308 = vmatprep.subr.bf16.mxu0 0
        %309 = vmatpush1.bf16.msra.mxu0 %v281
        %310 = vmatprep.subr.bf16.mxu0 0
        %311 = vmatpush1.bf16.msra.mxu0 %v280
        %312 = vmatprep.subr.bf16.mxu0 0
        %313 = vmatpush2.bf16.msra.mxu0 0
        %314 = vmatprep.subr.bf16.mxu0 0
        %315 = vmatpush2.bf16.msra.mxu0 0
        %316 = vmatprep.subr.bf16.mxu0 0
        %317 = vmatpush2.bf16.msra.mxu0 0
        %318 = vmatprep.subr.bf16.mxu0 0
        %319 = vmatpush2.bf16.msra.mxu0 0
        %320 = vmatprep.subr.bf16.mxu0 0
        %321 = vmatpush2.bf16.msra.mxu0 0
        %322 = vmatprep.subr.bf16.mxu0 0
        %323 = vmatpush2.bf16.msra.mxu0 0
        %324 = vmatprep.subr.bf16.mxu0 0
        %325 = vmatpush2.bf16.msra.mxu0 0
        %326 = vmatprep.subr.bf16.mxu0 0
        %327 = vmatpush2.bf16.msra.mxu0 0
        %328 = vmatprep.mubr.bf16.mxu0 0
        %329 = vmatmul.mubr.bf16.gmra.mxu0 %v240
        %v330 = vpop.f32.mrf.mxu0
        %v331 = vadd.f32 0.0, %v330
        %v332 = vpop.f32.mrf.mxu0
        %v333 = vpop.f32.mrf.mxu0
        %v334 = vadd.f32 0.0, %v333
        %v335 = vpop.f32.mrf.mxu0
        %336 = vmatprep.mubr.bf16.mxu0 0
        %337 = vmatmul.mubr.bf16.gmra.mxu0 %v241
        %v338 = vpop.f32.mrf.mxu0
        %v339 = vadd.f32 0.0, %v338
        %v340 = vpop.f32.mrf.mxu0
        %v341 = vpop.f32.mrf.mxu0
        %v342 = vadd.f32 0.0, %v341
        %v343 = vpop.f32.mrf.mxu0
        %344 = vmatprep.mubr.bf16.mxu0 0
        %345 = vmatmul.mubr.bf16.gmra.mxu0 %v242
        %v346 = vpop.f32.mrf.mxu0
        %v347 = vadd.f32 0.0, %v346
        %v348 = vpop.f32.mrf.mxu0
        %v349 = vpop.f32.mrf.mxu0
        %v350 = vadd.f32 0.0, %v349
        %v351 = vpop.f32.mrf.mxu0
        %352 = vmatprep.mubr.bf16.mxu0 0
        %353 = vmatmul.mubr.bf16.gmra.mxu0 %v243
        %v354 = vpop.f32.mrf.mxu0
        %v355 = vadd.f32 0.0, %v354
        %v356 = vpop.f32.mrf.mxu0
        %v357 = vpop.f32.mrf.mxu0
        %v358 = vadd.f32 0.0, %v357
        %v359 = vpop.f32.mrf.mxu0
        %360 = vdwg.mxu0
        %v361 = vlaneseq
        %v362 = vshrl.u32 %v361, 7
        %v363 = vsub.s32 0, %v362
        %v364 = vrot.slane %v196, %v363
        %v365 = vmul.f32 %v331, %v364
        %v366 = vmul.f32 %v334, %v364
        %v367 = vmul.f32 %v339, %v364
        %v368 = vmul.f32 %v342, %v364
        %v369 = vmul.f32 %v347, %v364
        %v370 = vmul.f32 %v350, %v364
        %v371 = vmul.f32 %v355, %v364
        %v372 = vmul.f32 %v358, %v364
        %v373 = vlaneseq
        %v374 = vshrl.u32 %v373, 7
        %v375 = vsub.s32 1, %v374
        %v376 = vrot.slane %v196, %v375
        %v377 = vadd.f32 %v365, %v376
        %v378 = vadd.f32 %v366, %v376
        %v379 = vadd.f32 %v367, %v376
        %v380 = vadd.f32 %v368, %v376
        %v381 = vadd.f32 %v369, %v376
        %v382 = vadd.f32 %v370, %v376
        %v383 = vadd.f32 %v371, %v376
        %v384 = vadd.f32 %v372, %v376
        %v385 = vxor.u32 %v377, 2147483648
        %v386 = vxor.u32 %v378, 2147483648
        %v387 = vxor.u32 %v379, 2147483648
        %v388 = vxor.u32 %v380, 2147483648
        %v389 = vxor.u32 %v381, 2147483648
        %v390 = vxor.u32 %v382, 2147483648
        %v391 = vxor.u32 %v383, 2147483648
        %v392 = vxor.u32 %v384, 2147483648
        %v393 = vmul.f32 %v385, 1.442695
        %v394 = vpow.pop %v393
        %v395 = vmul.f32 %v386, 1.442695
        %v396 = vpow.pop %v395
        %v397 = vmul.f32 %v387, 1.442695
        %v398 = vpow.pop %v397
        %v399 = vmul.f32 %v388, 1.442695
        %v400 = vpow.pop %v399
        %v401 = vmul.f32 %v389, 1.442695
        %v402 = vpow.pop %v401
        %v403 = vmul.f32 %v390, 1.442695
        %v404 = vpow.pop %v403
        %v405 = vmul.f32 %v391, 1.442695
        %v406 = vpow.pop %v405
        %v407 = vmul.f32 %v392, 1.442695
        %v408 = vpow.pop %v407
        %v409 = vadd.f32 %v394, 1.0
        %v410 = vadd.f32 %v396, 1.0
        %v411 = vadd.f32 %v398, 1.0
        %v412 = vadd.f32 %v400, 1.0
        %v413 = vadd.f32 %v402, 1.0
        %v414 = vadd.f32 %v404, 1.0
        %v415 = vadd.f32 %v406, 1.0
        %v416 = vadd.f32 %v408, 1.0
        %v417 = vrcp.pop %v409
        %v418 = vmul.f32 1.0, %v417
        %v419 = vrcp.pop %v410
        %v420 = vmul.f32 1.0, %v419
        %v421 = vrcp.pop %v411
        %v422 = vmul.f32 1.0, %v421
        %v423 = vrcp.pop %v412
        %v424 = vmul.f32 1.0, %v423
        %v425 = vrcp.pop %v413
        %v426 = vmul.f32 1.0, %v425
        %v427 = vrcp.pop %v414
        %v428 = vmul.f32 1.0, %v427
        %v429 = vrcp.pop %v415
        %v430 = vmul.f32 1.0, %v429
        %v431 = vrcp.pop %v416
        %v432 = vmul.f32 1.0, %v431
        %v433 = vmul.f32 %v377, %v418
        %v434 = vmul.f32 %v378, %v420
        %v435 = vmul.f32 %v379, %v422
        %v436 = vmul.f32 %v380, %v424
        %v437 = vmul.f32 %v381, %v426
        %v438 = vmul.f32 %v382, %v428
        %v439 = vmul.f32 %v383, %v430
        %v440 = vmul.f32 %v384, %v432
        %v441 = vpack.c.bf16 %v434, %v433
        %v442 = vpack.c.bf16 %v436, %v435
        %v443 = vpack.c.bf16 %v438, %v437
        %v444 = vpack.c.bf16 %v440, %v439
        %s445 = scalar_lea.vmem %s1, 64
        %v446 = vld [vmem:[%s445] sm:$0xf]
        %v447 = vld [vmem:[%s445 + $0x4] sm:$0xf]
        %v448 = vld [vmem:[%s445 + $0x8] sm:$0xf]
        %v449 = vld [vmem:[%s445 + $0xc] sm:$0xf]
        %v450 = vld [vmem:[%s445 + $0x10] sm:$0xf]
        %v451 = vld [vmem:[%s445 + $0x14] sm:$0xf]
        %v452 = vld [vmem:[%s445 + $0x18] sm:$0xf]
        %v453 = vld [vmem:[%s445 + $0x1c] sm:$0xf]
        %v454 = vld [vmem:[%s445 + $0x20] sm:$0xf]
        %v455 = vld [vmem:[%s445 + $0x24] sm:$0xf]
        %v456 = vld [vmem:[%s445 + $0x28] sm:$0xf]
        %v457 = vld [vmem:[%s445 + $0x2c] sm:$0xf]
        %v458 = vld [vmem:[%s445 + $0x30] sm:$0xf]
        %v459 = vld [vmem:[%s445 + $0x34] sm:$0xf]
        %v460 = vld [vmem:[%s445 + $0x38] sm:$0xf]
        %v461 = vld [vmem:[%s445 + $0x3c] sm:$0xf]
        %v478 = vunpack.c.l.b16 %v446
        %v479 = vunpack.c.l.b16 %v447
        %v480 = vunpack.c.l.b16 %v448
        %v481 = vunpack.c.l.b16 %v449
        %v482 = vunpack.c.l.b16 %v450
        %v483 = vunpack.c.l.b16 %v451
        %v484 = vunpack.c.l.b16 %v452
        %v485 = vunpack.c.l.b16 %v453
        %v486 = vunpack.c.l.b16 %v454
        %v487 = vunpack.c.l.b16 %v455
        %v488 = vunpack.c.l.b16 %v456
        %v489 = vunpack.c.l.b16 %v457
        %v490 = vunpack.c.l.b16 %v458
        %v491 = vunpack.c.l.b16 %v459
        %v492 = vunpack.c.l.b16 %v460
        %v493 = vunpack.c.l.b16 %v461
        %v494 = vpack.c.b16 %v479, %v478
        %v495 = vpack.c.b16 %v481, %v480
        %v496 = vpack.c.b16 %v483, %v482
        %v497 = vpack.c.b16 %v485, %v484
        %v498 = vpack.c.b16 %v487, %v486
        %v499 = vpack.c.b16 %v489, %v488
        %v500 = vpack.c.b16 %v491, %v490
        %v501 = vpack.c.b16 %v493, %v492
        %510 = vmatprep.subr.bf16.mxu0 0
        %511 = vmatpush1.bf16.msra.mxu0 %v501
        %512 = vmatprep.subr.bf16.mxu0 0
        %513 = vmatpush1.bf16.msra.mxu0 %v500
        %514 = vmatprep.subr.bf16.mxu0 0
        %515 = vmatpush1.bf16.msra.mxu0 %v499
        %516 = vmatprep.subr.bf16.mxu0 0
        %517 = vmatpush1.bf16.msra.mxu0 %v498
        %518 = vmatprep.subr.bf16.mxu0 0
        %519 = vmatpush1.bf16.msra.mxu0 %v497
        %520 = vmatprep.subr.bf16.mxu0 0
        %521 = vmatpush1.bf16.msra.mxu0 %v496
        %522 = vmatprep.subr.bf16.mxu0 0
        %523 = vmatpush1.bf16.msra.mxu0 %v495
        %524 = vmatprep.subr.bf16.mxu0 0
        %525 = vmatpush1.bf16.msra.mxu0 %v494
        %526 = vmatprep.subr.bf16.mxu0 0
        %527 = vmatpush2.bf16.msra.mxu0 0
        %528 = vmatprep.subr.bf16.mxu0 0
        %529 = vmatpush2.bf16.msra.mxu0 0
        %530 = vmatprep.subr.bf16.mxu0 0
        %531 = vmatpush2.bf16.msra.mxu0 0
        %532 = vmatprep.subr.bf16.mxu0 0
        %533 = vmatpush2.bf16.msra.mxu0 0
        %534 = vmatprep.subr.bf16.mxu0 0
        %535 = vmatpush2.bf16.msra.mxu0 0
        %536 = vmatprep.subr.bf16.mxu0 0
        %537 = vmatpush2.bf16.msra.mxu0 0
        %538 = vmatprep.subr.bf16.mxu0 0
        %539 = vmatpush2.bf16.msra.mxu0 0
        %540 = vmatprep.subr.bf16.mxu0 0
        %541 = vmatpush2.bf16.msra.mxu0 0
        %542 = vmatprep.mubr.bf16.mxu0 0
        %543 = vmatmul.mubr.bf16.gmra.mxu0 %v441
        %v544 = vpop.f32.mrf.mxu0
        %v545 = vadd.f32 0.0, %v544
        %v546 = vpop.f32.mrf.mxu0
        %v547 = vpop.f32.mrf.mxu0
        %v548 = vadd.f32 0.0, %v547
        %v549 = vpop.f32.mrf.mxu0
        %550 = vmatprep.mubr.bf16.mxu0 0
        %551 = vmatmul.mubr.bf16.gmra.mxu0 %v442
        %v552 = vpop.f32.mrf.mxu0
        %v553 = vadd.f32 0.0, %v552
        %v554 = vpop.f32.mrf.mxu0
        %v555 = vpop.f32.mrf.mxu0
        %v556 = vadd.f32 0.0, %v555
        %v557 = vpop.f32.mrf.mxu0
        %558 = vmatprep.mubr.bf16.mxu0 0
        %559 = vmatmul.mubr.bf16.gmra.mxu0 %v443
        %v560 = vpop.f32.mrf.mxu0
        %v561 = vadd.f32 0.0, %v560
        %v562 = vpop.f32.mrf.mxu0
        %v563 = vpop.f32.mrf.mxu0
        %v564 = vadd.f32 0.0, %v563
        %v565 = vpop.f32.mrf.mxu0
        %566 = vmatprep.mubr.bf16.mxu0 0
        %567 = vmatmul.mubr.bf16.gmra.mxu0 %v444
        %v568 = vpop.f32.mrf.mxu0
        %v569 = vadd.f32 0.0, %v568
        %v570 = vpop.f32.mrf.mxu0
        %v571 = vpop.f32.mrf.mxu0
        %v572 = vadd.f32 0.0, %v571
        %v573 = vpop.f32.mrf.mxu0
        %574 = vdwg.mxu0
        %v575 = vlaneseq
        %v576 = vshrl.u32 %v575, 7
        %v577 = vsub.s32 2, %v576
        %v578 = vrot.slane %v196, %v577
        %v579 = vmul.f32 %v545, %v578
        %v580 = vmul.f32 %v548, %v578
        %v581 = vmul.f32 %v553, %v578
        %v582 = vmul.f32 %v556, %v578
        %v583 = vmul.f32 %v561, %v578
        %v584 = vmul.f32 %v564, %v578
        %v585 = vmul.f32 %v569, %v578
        %v586 = vmul.f32 %v572, %v578
        %v587 = vlaneseq
        %v588 = vshrl.u32 %v587, 7
        %v589 = vsub.s32 3, %v588
        %v590 = vrot.slane %v196, %v589
        %v591 = vadd.f32 %v579, %v590
        %v592 = vadd.f32 %v580, %v590
        %v593 = vadd.f32 %v581, %v590
        %v594 = vadd.f32 %v582, %v590
        %v595 = vadd.f32 %v583, %v590
        %v596 = vadd.f32 %v584, %v590
        %v597 = vadd.f32 %v585, %v590
        %v598 = vadd.f32 %v586, %v590
        %v599 = vxor.u32 %v591, 2147483648
        %v600 = vxor.u32 %v592, 2147483648
        %v601 = vxor.u32 %v593, 2147483648
        %v602 = vxor.u32 %v594, 2147483648
        %v603 = vxor.u32 %v595, 2147483648
        %v604 = vxor.u32 %v596, 2147483648
        %v605 = vxor.u32 %v597, 2147483648
        %v606 = vxor.u32 %v598, 2147483648
        %v607 = vmul.f32 %v599, 1.442695
        %v608 = vpow.pop %v607
        %v609 = vmul.f32 %v600, 1.442695
        %v610 = vpow.pop %v609
        %v611 = vmul.f32 %v601, 1.442695
        %v612 = vpow.pop %v611
        %v613 = vmul.f32 %v602, 1.442695
        %v614 = vpow.pop %v613
        %v615 = vmul.f32 %v603, 1.442695
        %v616 = vpow.pop %v615
        %v617 = vmul.f32 %v604, 1.442695
        %v618 = vpow.pop %v617
        %v619 = vmul.f32 %v605, 1.442695
        %v620 = vpow.pop %v619
        %v621 = vmul.f32 %v606, 1.442695
        %v622 = vpow.pop %v621
        %v623 = vadd.f32 %v608, 1.0
        %v624 = vadd.f32 %v610, 1.0
        %v625 = vadd.f32 %v612, 1.0
        %v626 = vadd.f32 %v614, 1.0
        %v627 = vadd.f32 %v616, 1.0
        %v628 = vadd.f32 %v618, 1.0
        %v629 = vadd.f32 %v620, 1.0
        %v630 = vadd.f32 %v622, 1.0
        %v631 = vrcp.pop %v623
        %v632 = vmul.f32 1.0, %v631
        %v633 = vrcp.pop %v624
        %v634 = vmul.f32 1.0, %v633
        %v635 = vrcp.pop %v625
        %v636 = vmul.f32 1.0, %v635
        %v637 = vrcp.pop %v626
        %v638 = vmul.f32 1.0, %v637
        %v639 = vrcp.pop %v627
        %v640 = vmul.f32 1.0, %v639
        %v641 = vrcp.pop %v628
        %v642 = vmul.f32 1.0, %v641
        %v643 = vrcp.pop %v629
        %v644 = vmul.f32 1.0, %v643
        %v645 = vrcp.pop %v630
        %v646 = vmul.f32 1.0, %v645
        %v647 = vmul.f32 %v591, %v632
        %v648 = vmul.f32 %v592, %v634
        %v649 = vmul.f32 %v593, %v636
        %v650 = vmul.f32 %v594, %v638
        %v651 = vmul.f32 %v595, %v640
        %v652 = vmul.f32 %v596, %v642
        %v653 = vmul.f32 %v597, %v644
        %v654 = vmul.f32 %v598, %v646
        %655 = vst [vmem:[#allocation2] sm:$0xff] 0.0
        %656 = vst [vmem:[#allocation2 + $0x8] sm:$0x3] 0.0
        %657 = vst [vmem:[#allocation2 + $0x10] sm:$0xff] 0.0
        %658 = vst [vmem:[#allocation2 + $0x18] sm:$0x3] 0.0
        %659 = vst [vmem:[#allocation2 + $0x20] sm:$0xff] 0.0
        %660 = vst [vmem:[#allocation2 + $0x28] sm:$0x3] 0.0
        %661 = vst [vmem:[#allocation2 + $0x30] sm:$0xff] 0.0
        %662 = vst [vmem:[#allocation2 + $0x38] sm:$0x3] 0.0
        %663 = vst [vmem:[#allocation2 + $0x40] sm:$0xff] 0.0
        %664 = vst [vmem:[#allocation2 + $0x48] sm:$0x3] 0.0
        %665 = vst [vmem:[#allocation2 + $0x50] sm:$0xff] 0.0
        %666 = vst [vmem:[#allocation2 + $0x58] sm:$0x3] 0.0
        %667 = vst [vmem:[#allocation2 + $0x60] sm:$0xff] 0.0
        %668 = vst [vmem:[#allocation2 + $0x68] sm:$0x3] 0.0
        %669 = vst [vmem:[#allocation2 + $0x70] sm:$0xff] 0.0
        %670 = vst [vmem:[#allocation2 + $0x78] sm:$0x3] 0.0
        %671 = vst [vmem:[#allocation2 + $0x80] sm:$0xff] 0.0
        %672 = vst [vmem:[#allocation2 + $0x88] sm:$0x3] 0.0
        %673 = vst [vmem:[#allocation2 + $0x90] sm:$0xff] 0.0
        %674 = vst [vmem:[#allocation2 + $0x98] sm:$0x3] 0.0
        %s675 = scalar_lea.vmem [#allocation2], 16
        %676 = vst [vmem:[%s675 + $0x1] sm:$0xff] %v647
        %677 = vst [vmem:[%s675 + $0x11] sm:$0xff] %v648
        %678 = vst [vmem:[%s675 + $0x21] sm:$0xff] %v649
        %679 = vst [vmem:[%s675 + $0x31] sm:$0xff] %v650
        %680 = vst [vmem:[%s675 + $0x41] sm:$0xff] %v651
        %681 = vst [vmem:[%s675 + $0x51] sm:$0xff] %v652
        %682 = vst [vmem:[%s675 + $0x61] sm:$0xff] %v653
        %683 = vst [vmem:[%s675 + $0x71] sm:$0xff] %v654
        %v684 = vld [vmem:[#allocation2] sm:$0xff]
        %v685 = vld [vmem:[#allocation2 + $0x10] sm:$0xff]
        %v686 = vld [vmem:[#allocation2 + $0x20] sm:$0xff]
        %v687 = vld [vmem:[#allocation2 + $0x30] sm:$0xff]
        %v688 = vld [vmem:[#allocation2 + $0x40] sm:$0xff]
        %v689 = vld [vmem:[#allocation2 + $0x50] sm:$0xff]
        %v690 = vld [vmem:[#allocation2 + $0x60] sm:$0xff]
        %v691 = vld [vmem:[#allocation2 + $0x70] sm:$0xff]
        %v692 = vlaneseq
        %v693 = vshrl.u32 %v692, 7
        %v694 = vsub.s32 0, %v693
        %v695 = vrot.slane %v198, %v694
        %v696 = vmul.f32 %v684, %v695
        %v697 = vmul.f32 %v685, %v695
        %v698 = vmul.f32 %v686, %v695
        %v699 = vmul.f32 %v687, %v695
        %v700 = vmul.f32 %v688, %v695
        %v701 = vmul.f32 %v689, %v695
        %v702 = vmul.f32 %v690, %v695
        %v703 = vmul.f32 %v691, %v695
        %v704 = vadd.f32 %v696, 0.0
        %v705 = vadd.f32 %v697, 0.0
        %v706 = vadd.f32 %v698, 0.0
        %v707 = vadd.f32 %v699, 0.0
        %v708 = vadd.f32 %v700, 0.0
        %v709 = vadd.f32 %v701, 0.0
        %v710 = vadd.f32 %v702, 0.0
        %v711 = vadd.f32 %v703, 0.0
        %v712 = vld [vmem:[#allocation2 + $0x1] sm:$0xff]
        %v713 = vld [vmem:[#allocation2 + $0x11] sm:$0xff]
        %v714 = vld [vmem:[#allocation2 + $0x21] sm:$0xff]
        %v715 = vld [vmem:[#allocation2 + $0x31] sm:$0xff]
        %v716 = vld [vmem:[#allocation2 + $0x41] sm:$0xff]
        %v717 = vld [vmem:[#allocation2 + $0x51] sm:$0xff]
        %v718 = vld [vmem:[#allocation2 + $0x61] sm:$0xff]
        %v719 = vld [vmem:[#allocation2 + $0x71] sm:$0xff]
        %v720 = vlaneseq
        %v721 = vshrl.u32 %v720, 7
        %v722 = vsub.s32 1, %v721
        %v723 = vrot.slane %v198, %v722
        %v724 = vmul.f32 %v712, %v723
        %v725 = vmul.f32 %v713, %v723
        %v726 = vmul.f32 %v714, %v723
        %v727 = vmul.f32 %v715, %v723
        %v728 = vmul.f32 %v716, %v723
        %v729 = vmul.f32 %v717, %v723
        %v730 = vmul.f32 %v718, %v723
        %v731 = vmul.f32 %v719, %v723
        %v732 = vadd.f32 %v704, %v724
        %v733 = vadd.f32 %v705, %v725
        %v734 = vadd.f32 %v706, %v726
        %v735 = vadd.f32 %v707, %v727
        %v736 = vadd.f32 %v708, %v728
        %v737 = vadd.f32 %v709, %v729
        %v738 = vadd.f32 %v710, %v730
        %v739 = vadd.f32 %v711, %v731
        %v740 = vld [vmem:[#allocation2 + $0x2] sm:$0xff]
        %v741 = vld [vmem:[#allocation2 + $0x12] sm:$0xff]
        %v742 = vld [vmem:[#allocation2 + $0x22] sm:$0xff]
        %v743 = vld [vmem:[#allocation2 + $0x32] sm:$0xff]
        %v744 = vld [vmem:[#allocation2 + $0x42] sm:$0xff]
        %v745 = vld [vmem:[#allocation2 + $0x52] sm:$0xff]
        %v746 = vld [vmem:[#allocation2 + $0x62] sm:$0xff]
        %v747 = vld [vmem:[#allocation2 + $0x72] sm:$0xff]
        %v748 = vlaneseq
        %v749 = vshrl.u32 %v748, 7
        %v750 = vsub.s32 2, %v749
        %v751 = vrot.slane %v198, %v750
        %v752 = vmul.f32 %v740, %v751
        %v753 = vmul.f32 %v741, %v751
        %v754 = vmul.f32 %v742, %v751
        %v755 = vmul.f32 %v743, %v751
        %v756 = vmul.f32 %v744, %v751
        %v757 = vmul.f32 %v745, %v751
        %v758 = vmul.f32 %v746, %v751
        %v759 = vmul.f32 %v747, %v751
        %v760 = vadd.f32 %v732, %v752
        %v761 = vadd.f32 %v733, %v753
        %v762 = vadd.f32 %v734, %v754
        %v763 = vadd.f32 %v735, %v755
        %v764 = vadd.f32 %v736, %v756
        %v765 = vadd.f32 %v737, %v757
        %v766 = vadd.f32 %v738, %v758
        %v767 = vadd.f32 %v739, %v759
        %v768 = vld [vmem:[%s675] sm:$0xff]
        %v769 = vld [vmem:[%s675 + $0x10] sm:$0xff]
        %v770 = vld [vmem:[%s675 + $0x20] sm:$0xff]
        %v771 = vld [vmem:[%s675 + $0x30] sm:$0xff]
        %v772 = vld [vmem:[%s675 + $0x40] sm:$0xff]
        %v773 = vld [vmem:[%s675 + $0x50] sm:$0xff]
        %v774 = vld [vmem:[%s675 + $0x60] sm:$0xff]
        %v775 = vld [vmem:[%s675 + $0x70] sm:$0xff]
        %v776 = vlaneseq
        %v777 = vshrl.u32 %v776, 7
        %v778 = vsub.s32 3, %v777
        %v779 = vrot.slane %v198, %v778
        %v780 = vmul.f32 %v768, %v779
        %v781 = vmul.f32 %v769, %v779
        %v782 = vmul.f32 %v770, %v779
        %v783 = vmul.f32 %v771, %v779
        %v784 = vmul.f32 %v772, %v779
        %v785 = vmul.f32 %v773, %v779
        %v786 = vmul.f32 %v774, %v779
        %v787 = vmul.f32 %v775, %v779
        %v788 = vadd.f32 %v760, %v780
        %v789 = vadd.f32 %v761, %v781
        %v790 = vadd.f32 %v762, %v782
        %v791 = vadd.f32 %v763, %v783
        %v792 = vadd.f32 %v764, %v784
        %v793 = vadd.f32 %v765, %v785
        %v794 = vadd.f32 %v766, %v786
        %v795 = vadd.f32 %v767, %v787
        %v796 = vld [vmem:[%s675 + $0x1] sm:$0xff]
        %v797 = vld [vmem:[%s675 + $0x11] sm:$0xff]
        %v798 = vld [vmem:[%s675 + $0x21] sm:$0xff]
        %v799 = vld [vmem:[%s675 + $0x31] sm:$0xff]
        %v800 = vld [vmem:[%s675 + $0x41] sm:$0xff]
        %v801 = vld [vmem:[%s675 + $0x51] sm:$0xff]
        %v802 = vld [vmem:[%s675 + $0x61] sm:$0xff]
        %v803 = vld [vmem:[%s675 + $0x71] sm:$0xff]
        %v804 = vlaneseq
        %v805 = vshrl.u32 %v804, 7
        %v806 = vsub.s32 4, %v805
        %v807 = vrot.slane %v198, %v806
        %v808 = vmul.f32 %v796, %v807
        %v809 = vmul.f32 %v797, %v807
        %v810 = vmul.f32 %v798, %v807
        %v811 = vmul.f32 %v799, %v807
        %v812 = vmul.f32 %v800, %v807
        %v813 = vmul.f32 %v801, %v807
        %v814 = vmul.f32 %v802, %v807
        %v815 = vmul.f32 %v803, %v807
        %v816 = vadd.f32 %v788, %v808
        %v817 = vadd.f32 %v789, %v809
        %v818 = vadd.f32 %v790, %v810
        %v819 = vadd.f32 %v791, %v811
        %v820 = vadd.f32 %v792, %v812
        %v821 = vadd.f32 %v793, %v813
        %v822 = vadd.f32 %v794, %v814
        %v823 = vadd.f32 %v795, %v815
        %v824 = vld [vmem:[%s675 + $0x2] sm:$0xff]
        %v825 = vld [vmem:[%s675 + $0x12] sm:$0xff]
        %v826 = vld [vmem:[%s675 + $0x22] sm:$0xff]
        %v827 = vld [vmem:[%s675 + $0x32] sm:$0xff]
        %v828 = vld [vmem:[%s675 + $0x42] sm:$0xff]
        %v829 = vld [vmem:[%s675 + $0x52] sm:$0xff]
        %v830 = vld [vmem:[%s675 + $0x62] sm:$0xff]
        %v831 = vld [vmem:[%s675 + $0x72] sm:$0xff]
        %v832 = vlaneseq
        %v833 = vshrl.u32 %v832, 7
        %v834 = vsub.s32 5, %v833
        %v835 = vrot.slane %v198, %v834
        %v836 = vmul.f32 %v824, %v835
        %v837 = vmul.f32 %v825, %v835
        %v838 = vmul.f32 %v826, %v835
        %v839 = vmul.f32 %v827, %v835
        %v840 = vmul.f32 %v828, %v835
        %v841 = vmul.f32 %v829, %v835
        %v842 = vmul.f32 %v830, %v835
        %v843 = vmul.f32 %v831, %v835
        %v844 = vadd.f32 %v816, %v836
        %v845 = vadd.f32 %v817, %v837
        %v846 = vadd.f32 %v818, %v838
        %v847 = vadd.f32 %v819, %v839
        %v848 = vadd.f32 %v820, %v840
        %v849 = vadd.f32 %v821, %v841
        %v850 = vadd.f32 %v822, %v842
        %v851 = vadd.f32 %v823, %v843
        %s852 = scalar_lea.vmem [#allocation2], 32
        %v853 = vld [vmem:[%s852] sm:$0xff]
        %v854 = vld [vmem:[%s852 + $0x10] sm:$0xff]
        %v855 = vld [vmem:[%s852 + $0x20] sm:$0xff]
        %v856 = vld [vmem:[%s852 + $0x30] sm:$0xff]
        %v857 = vld [vmem:[%s852 + $0x40] sm:$0xff]
        %v858 = vld [vmem:[%s852 + $0x50] sm:$0xff]
        %v859 = vld [vmem:[%s852 + $0x60] sm:$0xff]
        %v860 = vld [vmem:[%s852 + $0x70] sm:$0xff]
        %v861 = vlaneseq
        %v862 = vshrl.u32 %v861, 7
        %v863 = vsub.s32 6, %v862
        %v864 = vrot.slane %v198, %v863
        %v865 = vmul.f32 %v853, %v864
        %v866 = vmul.f32 %v854, %v864
        %v867 = vmul.f32 %v855, %v864
        %v868 = vmul.f32 %v856, %v864
        %v869 = vmul.f32 %v857, %v864
        %v870 = vmul.f32 %v858, %v864
        %v871 = vmul.f32 %v859, %v864
        %v872 = vmul.f32 %v860, %v864
        %v873 = vadd.f32 %v844, %v865
        %v874 = vadd.f32 %v845, %v866
        %v875 = vadd.f32 %v846, %v867
        %v876 = vadd.f32 %v847, %v868
        %v877 = vadd.f32 %v848, %v869
        %v878 = vadd.f32 %v849, %v870
        %v879 = vadd.f32 %v850, %v871
        %v880 = vadd.f32 %v851, %v872
        %v881 = vld [vmem:[%s852 + $0x1] sm:$0xff]
        %v882 = vld [vmem:[%s852 + $0x11] sm:$0xff]
        %v883 = vld [vmem:[%s852 + $0x21] sm:$0xff]
        %v884 = vld [vmem:[%s852 + $0x31] sm:$0xff]
        %v885 = vld [vmem:[%s852 + $0x41] sm:$0xff]
        %v886 = vld [vmem:[%s852 + $0x51] sm:$0xff]
        %v887 = vld [vmem:[%s852 + $0x61] sm:$0xff]
        %v888 = vld [vmem:[%s852 + $0x71] sm:$0xff]
        %v889 = vlaneseq
        %v890 = vshrl.u32 %v889, 7
        %v891 = vsub.s32 7, %v890
        %v892 = vrot.slane %v198, %v891
        %v893 = vmul.f32 %v881, %v892
        %v894 = vmul.f32 %v882, %v892
        %v895 = vmul.f32 %v883, %v892
        %v896 = vmul.f32 %v884, %v892
        %v897 = vmul.f32 %v885, %v892
        %v898 = vmul.f32 %v886, %v892
        %v899 = vmul.f32 %v887, %v892
        %v900 = vmul.f32 %v888, %v892
        %v901 = vadd.f32 %v873, %v893
        %v902 = vadd.f32 %v874, %v894
        %v903 = vadd.f32 %v875, %v895
        %v904 = vadd.f32 %v876, %v896
        %v905 = vadd.f32 %v877, %v897
        %v906 = vadd.f32 %v878, %v898
        %v907 = vadd.f32 %v879, %v899
        %v908 = vadd.f32 %v880, %v900
        %v909 = vld [vmem:[%s852 + $0x2] sm:$0xff]
        %v910 = vld [vmem:[%s852 + $0x12] sm:$0xff]
        %v911 = vld [vmem:[%s852 + $0x22] sm:$0xff]
        %v912 = vld [vmem:[%s852 + $0x32] sm:$0xff]
        %v913 = vld [vmem:[%s852 + $0x42] sm:$0xff]
        %v914 = vld [vmem:[%s852 + $0x52] sm:$0xff]
        %v915 = vld [vmem:[%s852 + $0x62] sm:$0xff]
        %v916 = vld [vmem:[%s852 + $0x72] sm:$0xff]
        %v917 = vlaneseq
        %v918 = vshrl.u32 %v917, 7
        %v919 = vsub.s32 0, %v918
        %v920 = vrot.slane %v199, %v919
        %v921 = vmul.f32 %v909, %v920
        %v922 = vmul.f32 %v910, %v920
        %v923 = vmul.f32 %v911, %v920
        %v924 = vmul.f32 %v912, %v920
        %v925 = vmul.f32 %v913, %v920
        %v926 = vmul.f32 %v914, %v920
        %v927 = vmul.f32 %v915, %v920
        %v928 = vmul.f32 %v916, %v920
        %v929 = vadd.f32 %v901, %v921
        %v930 = vadd.f32 %v902, %v922
        %v931 = vadd.f32 %v903, %v923
        %v932 = vadd.f32 %v904, %v924
        %v933 = vadd.f32 %v905, %v925
        %v934 = vadd.f32 %v906, %v926
        %v935 = vadd.f32 %v907, %v927
        %v936 = vadd.f32 %v908, %v928
        %v937 = vlaneseq
        %v938 = vshrl.u32 %v937, 7
        %v939 = vsub.s32 4, %v938
        %v940 = vrot.slane %v196, %v939
        %v941 = vmul.f32 %v929, %v940
        %v942 = vmul.f32 %v930, %v940
        %v943 = vmul.f32 %v931, %v940
        %v944 = vmul.f32 %v932, %v940
        %v945 = vmul.f32 %v933, %v940
        %v946 = vmul.f32 %v934, %v940
        %v947 = vmul.f32 %v935, %v940
        %v948 = vmul.f32 %v936, %v940
        %v949 = vlaneseq
        %v950 = vshrl.u32 %v949, 7
        %v951 = vsub.s32 5, %v950
        %v952 = vrot.slane %v196, %v951
        %v953 = vadd.f32 %v941, %v952
        %v954 = vadd.f32 %v942, %v952
        %v955 = vadd.f32 %v943, %v952
        %v956 = vadd.f32 %v944, %v952
        %v957 = vadd.f32 %v945, %v952
        %v958 = vadd.f32 %v946, %v952
        %v959 = vadd.f32 %v947, %v952
        %v960 = vadd.f32 %v948, %v952
        %v961 = vxor.u32 %v953, 2147483648
        %v962 = vxor.u32 %v954, 2147483648
        %v963 = vxor.u32 %v955, 2147483648
        %v964 = vxor.u32 %v956, 2147483648
        %v965 = vxor.u32 %v957, 2147483648
        %v966 = vxor.u32 %v958, 2147483648
        %v967 = vxor.u32 %v959, 2147483648
        %v968 = vxor.u32 %v960, 2147483648
        %v969 = vmul.f32 %v961, 1.442695
        %v970 = vpow.pop %v969
        %v971 = vmul.f32 %v962, 1.442695
        %v972 = vpow.pop %v971
        %v973 = vmul.f32 %v963, 1.442695
        %v974 = vpow.pop %v973
        %v975 = vmul.f32 %v964, 1.442695
        %v976 = vpow.pop %v975
        %v977 = vmul.f32 %v965, 1.442695
        %v978 = vpow.pop %v977
        %v979 = vmul.f32 %v966, 1.442695
        %v980 = vpow.pop %v979
        %v981 = vmul.f32 %v967, 1.442695
        %v982 = vpow.pop %v981
        %v983 = vmul.f32 %v968, 1.442695
        %v984 = vpow.pop %v983
        %v985 = vadd.f32 %v970, 1.0
        %v986 = vadd.f32 %v972, 1.0
        %v987 = vadd.f32 %v974, 1.0
        %v988 = vadd.f32 %v976, 1.0
        %v989 = vadd.f32 %v978, 1.0
        %v990 = vadd.f32 %v980, 1.0
        %v991 = vadd.f32 %v982, 1.0
        %v992 = vadd.f32 %v984, 1.0
        %v993 = vrcp.pop %v985
        %v994 = vmul.f32 1.0, %v993
        %v995 = vrcp.pop %v986
        %v996 = vmul.f32 1.0, %v995
        %v997 = vrcp.pop %v987
        %v998 = vmul.f32 1.0, %v997
        %v999 = vrcp.pop %v988
        %v1000 = vmul.f32 1.0, %v999
        %v1001 = vrcp.pop %v989
        %v1002 = vmul.f32 1.0, %v1001
        %v1003 = vrcp.pop %v990
        %v1004 = vmul.f32 1.0, %v1003
        %v1005 = vrcp.pop %v991
        %v1006 = vmul.f32 1.0, %v1005
        %v1007 = vrcp.pop %v992
        %v1008 = vmul.f32 1.0, %v1007
        %v1009 = vmul.f32 %v953, %v994
        %v1010 = vmul.f32 %v954, %v996
        %v1011 = vmul.f32 %v955, %v998
        %v1012 = vmul.f32 %v956, %v1000
        %v1013 = vmul.f32 %v957, %v1002
        %v1014 = vmul.f32 %v958, %v1004
        %v1015 = vmul.f32 %v959, %v1006
        %v1016 = vmul.f32 %v960, %v1008
        %v1017 = vadd.f32 %v1009, %v1010
        %v1018 = vadd.f32 %v1017, %v1011
        %v1019 = vadd.f32 %v1018, %v1012
        %v1020 = vadd.f32 %v1019, %v1013
        %v1021 = vadd.f32 %v1020, %v1014
        %v1022 = vadd.f32 %v1021, %v1015
        %v1023 = vadd.f32 %v1022, %v1016
        %v1024 = vrot.slane %v1023, 4
        %v1025 = vadd.f32 %v1023, %v1024
        %v1026 = vrot.slane %v1025, 2
        %v1027 = vadd.f32 %v1025, %v1026
        %v1028 = vrot.slane %v1027, 1
        %v1029 = vadd.f32 %v1027, %v1028
        %v1030 = vrcp.pop 64.0
        %v1031 = vmul.f32 %v1029, %v1030
        %v1032 = vpack.c.bf16 %v1031, %v1031
        %s1033 = scalar_lea.vmem %s1, 128
        %v1034 = vld [vmem:[%s1033] sm:$0xf]
        %v1035 = vld [vmem:[%s1033 + $0x4] sm:$0xf]
        %v1036 = vld [vmem:[%s1033 + $0x8] sm:$0xf]
        %v1037 = vld [vmem:[%s1033 + $0xc] sm:$0xf]
        %v1038 = vld [vmem:[%s1033 + $0x10] sm:$0xf]
        %v1039 = vld [vmem:[%s1033 + $0x14] sm:$0xf]
        %v1040 = vld [vmem:[%s1033 + $0x18] sm:$0xf]
        %v1041 = vld [vmem:[%s1033 + $0x1c] sm:$0xf]
        %v1042 = vld [vmem:[%s1033 + $0x20] sm:$0xf]
        %v1043 = vld [vmem:[%s1033 + $0x24] sm:$0xf]
        %v1044 = vld [vmem:[%s1033 + $0x28] sm:$0xf]
        %v1045 = vld [vmem:[%s1033 + $0x2c] sm:$0xf]
        %v1046 = vld [vmem:[%s1033 + $0x30] sm:$0xf]
        %v1047 = vld [vmem:[%s1033 + $0x34] sm:$0xf]
        %v1048 = vld [vmem:[%s1033 + $0x38] sm:$0xf]
        %v1049 = vld [vmem:[%s1033 + $0x3c] sm:$0xf]
        %v1066 = vunpack.c.l.b16 %v1034
        %v1067 = vunpack.c.l.b16 %v1035
        %v1068 = vunpack.c.l.b16 %v1036
        %v1069 = vunpack.c.l.b16 %v1037
        %v1070 = vunpack.c.l.b16 %v1038
        %v1071 = vunpack.c.l.b16 %v1039
        %v1072 = vunpack.c.l.b16 %v1040
        %v1073 = vunpack.c.l.b16 %v1041
        %v1074 = vunpack.c.l.b16 %v1042
        %v1075 = vunpack.c.l.b16 %v1043
        %v1076 = vunpack.c.l.b16 %v1044
        %v1077 = vunpack.c.l.b16 %v1045
        %v1078 = vunpack.c.l.b16 %v1046
        %v1079 = vunpack.c.l.b16 %v1047
        %v1080 = vunpack.c.l.b16 %v1048
        %v1081 = vunpack.c.l.b16 %v1049
        %v1082 = vpack.c.b16 %v1067, %v1066
        %v1083 = vpack.c.b16 %v1069, %v1068
        %v1084 = vpack.c.b16 %v1071, %v1070
        %v1085 = vpack.c.b16 %v1073, %v1072
        %v1086 = vpack.c.b16 %v1075, %v1074
        %v1087 = vpack.c.b16 %v1077, %v1076
        %v1088 = vpack.c.b16 %v1079, %v1078
        %v1089 = vpack.c.b16 %v1081, %v1080
        %v1099 = vrot.slane %v196, 6
        %1101 = vmatprep.subr.bf16.mxu0 0
        %1102 = vmatpush1.bf16.msra.mxu0 %v1089
        %1103 = vmatprep.subr.bf16.mxu0 0
        %1104 = vmatpush1.bf16.msra.mxu0 %v1088
        %1105 = vmatprep.subr.bf16.mxu0 0
        %1106 = vmatpush1.bf16.msra.mxu0 %v1087
        %1107 = vmatprep.subr.bf16.mxu0 0
        %1108 = vmatpush1.bf16.msra.mxu0 %v1086
        %1109 = vmatprep.subr.bf16.mxu0 0
        %1110 = vmatpush1.bf16.msra.mxu0 %v1085
        %1111 = vmatprep.subr.bf16.mxu0 0
        %1112 = vmatpush1.bf16.msra.mxu0 %v1084
        %1113 = vmatprep.subr.bf16.mxu0 0
        %1114 = vmatpush1.bf16.msra.mxu0 %v1083
        %1115 = vmatprep.subr.bf16.mxu0 0
        %1116 = vmatpush1.bf16.msra.mxu0 %v1082
        %1117 = vmatprep.subr.bf16.mxu0 0
        %1118 = vmatpush2.bf16.msra.mxu0 0
        %1119 = vmatprep.subr.bf16.mxu0 0
        %1120 = vmatpush2.bf16.msra.mxu0 0
        %1121 = vmatprep.subr.bf16.mxu0 0
        %1122 = vmatpush2.bf16.msra.mxu0 0
        %1123 = vmatprep.subr.bf16.mxu0 0
        %1124 = vmatpush2.bf16.msra.mxu0 0
        %1125 = vmatprep.subr.bf16.mxu0 0
        %1126 = vmatpush2.bf16.msra.mxu0 0
        %1127 = vmatprep.subr.bf16.mxu0 0
        %1128 = vmatpush2.bf16.msra.mxu0 0
        %1129 = vmatprep.subr.bf16.mxu0 0
        %1130 = vmatpush2.bf16.msra.mxu0 0
        %1131 = vmatprep.subr.bf16.mxu0 0
        %1132 = vmatpush2.bf16.msra.mxu0 0
        %1133 = vmatprep.mubr.bf16.mxu0 0
        %1134 = vmatmul.mubr.bf16.gmra.mxu0 %v1032
        %v1135 = vpop.f32.mrf.mxu0
        %v1136 = vadd.f32 %v1099, %v1135
        %v1137 = vpop.f32.mrf.mxu0
        %v1138 = vpop.f32.mrf.mxu0
        %v1139 = vpop.f32.mrf.mxu0
        %1140 = vdwg.mxu0
        %v1141 = vxor.u32 %v1136, 2147483648
        %v1142 = vmul.f32 %v1141, 1.442695
        %v1143 = vpow.pop %v1142
        %v1144 = vadd.f32 %v1143, 1.0
        %v1145 = vrcp.pop %v1144
        %v1146 = vmul.f32 1.0, %v1145
        %v1147 = vmul.f32 %v1136, %v1146
        %v1148 = vpack.c.bf16 %v1147, %v1147
        %s1149 = scalar_lea.vmem %s1, 192
        %v1150 = vld [vmem:[%s1149] sm:$0xf]
        %v1151 = vld [vmem:[%s1149 + $0x4] sm:$0xf]
        %v1152 = vld [vmem:[%s1149 + $0x8] sm:$0xf]
        %v1153 = vld [vmem:[%s1149 + $0xc] sm:$0xf]
        %v1154 = vld [vmem:[%s1149 + $0x10] sm:$0xf]
        %v1155 = vld [vmem:[%s1149 + $0x14] sm:$0xf]
        %v1156 = vld [vmem:[%s1149 + $0x18] sm:$0xf]
        %v1157 = vld [vmem:[%s1149 + $0x1c] sm:$0xf]
        %v1158 = vld [vmem:[%s1149 + $0x20] sm:$0xf]
        %v1159 = vld [vmem:[%s1149 + $0x24] sm:$0xf]
        %v1160 = vld [vmem:[%s1149 + $0x28] sm:$0xf]
        %v1161 = vld [vmem:[%s1149 + $0x2c] sm:$0xf]
        %v1162 = vld [vmem:[%s1149 + $0x30] sm:$0xf]
        %v1163 = vld [vmem:[%s1149 + $0x34] sm:$0xf]
        %v1164 = vld [vmem:[%s1149 + $0x38] sm:$0xf]
        %v1165 = vld [vmem:[%s1149 + $0x3c] sm:$0xf]
        %v1182 = vunpack.c.l.b16 %v1150
        %v1183 = vunpack.c.l.b16 %v1151
        %v1184 = vunpack.c.l.b16 %v1152
        %v1185 = vunpack.c.l.b16 %v1153
        %v1186 = vunpack.c.l.b16 %v1154
        %v1187 = vunpack.c.l.b16 %v1155
        %v1188 = vunpack.c.l.b16 %v1156
        %v1189 = vunpack.c.l.b16 %v1157
        %v1190 = vunpack.c.l.b16 %v1158
        %v1191 = vunpack.c.l.b16 %v1159
        %v1192 = vunpack.c.l.b16 %v1160
        %v1193 = vunpack.c.l.b16 %v1161
        %v1194 = vunpack.c.l.b16 %v1162
        %v1195 = vunpack.c.l.b16 %v1163
        %v1196 = vunpack.c.l.b16 %v1164
        %v1197 = vunpack.c.l.b16 %v1165
        %v1198 = vpack.c.b16 %v1183, %v1182
        %v1199 = vpack.c.b16 %v1185, %v1184
        %v1200 = vpack.c.b16 %v1187, %v1186
        %v1201 = vpack.c.b16 %v1189, %v1188
        %v1202 = vpack.c.b16 %v1191, %v1190
        %v1203 = vpack.c.b16 %v1193, %v1192
        %v1204 = vpack.c.b16 %v1195, %v1194
        %v1205 = vpack.c.b16 %v1197, %v1196
        %v1214 = vrot.slane %v196, 7
        %1216 = vmatprep.subr.bf16.mxu0 0
        %1217 = vmatpush1.bf16.msra.mxu0 %v1205
        %1218 = vmatprep.subr.bf16.mxu0 0
        %1219 = vmatpush1.bf16.msra.mxu0 %v1204
        %1220 = vmatprep.subr.bf16.mxu0 0
        %1221 = vmatpush1.bf16.msra.mxu0 %v1203
        %1222 = vmatprep.subr.bf16.mxu0 0
        %1223 = vmatpush1.bf16.msra.mxu0 %v1202
        %1224 = vmatprep.subr.bf16.mxu0 0
        %1225 = vmatpush1.bf16.msra.mxu0 %v1201
        %1226 = vmatprep.subr.bf16.mxu0 0
        %1227 = vmatpush1.bf16.msra.mxu0 %v1200
        %1228 = vmatprep.subr.bf16.mxu0 0
        %1229 = vmatpush1.bf16.msra.mxu0 %v1199
        %1230 = vmatprep.subr.bf16.mxu0 0
        %1231 = vmatpush1.bf16.msra.mxu0 %v1198
        %1232 = vmatprep.subr.bf16.mxu0 0
        %1233 = vmatpush2.bf16.msra.mxu0 0
        %1234 = vmatprep.subr.bf16.mxu0 0
        %1235 = vmatpush2.bf16.msra.mxu0 0
        %1236 = vmatprep.subr.bf16.mxu0 0
        %1237 = vmatpush2.bf16.msra.mxu0 0
        %1238 = vmatprep.subr.bf16.mxu0 0
        %1239 = vmatpush2.bf16.msra.mxu0 0
        %1240 = vmatprep.subr.bf16.mxu0 0
        %1241 = vmatpush2.bf16.msra.mxu0 0
        %1242 = vmatprep.subr.bf16.mxu0 0
        %1243 = vmatpush2.bf16.msra.mxu0 0
        %1244 = vmatprep.subr.bf16.mxu0 0
        %1245 = vmatpush2.bf16.msra.mxu0 0
        %1246 = vmatprep.subr.bf16.mxu0 0
        %1247 = vmatpush2.bf16.msra.mxu0 0
        %1248 = vmatprep.mubr.bf16.mxu0 0
        %1249 = vmatmul.mubr.bf16.gmra.mxu0 %v1148
        %v1250 = vpop.f32.mrf.mxu0
        %v1251 = vadd.f32 %v1214, %v1250
        %v1252 = vpop.f32.mrf.mxu0
        %v1253 = vpop.f32.mrf.mxu0
        %v1254 = vpop.f32.mrf.mxu0
        %1255 = vdwg.mxu0
        %v1256 = vxor.u32 %v1251, 2147483648
        %v1257 = vmul.f32 %v1256, 1.442695
        %v1258 = vpow.pop %v1257
        %v1259 = vadd.f32 %v1258, 1.0
        %v1260 = vrcp.pop %v1259
        %v1261 = vmul.f32 1.0, %v1260
        %v1262 = vlaneseq
        %v1263 = vshrl.u32 %v1262, 7
        %v1264 = vsub.s32 0, %v1263
        %v1265 = vrot.slane %v1261, %v1264
        %v1266 = vmul.f32 %v1009, %v1265
        %v1267 = vmul.f32 %v1010, %v1265
        %v1268 = vmul.f32 %v1011, %v1265
        %v1269 = vmul.f32 %v1012, %v1265
        %v1270 = vmul.f32 %v1013, %v1265
        %v1271 = vmul.f32 %v1014, %v1265
        %v1272 = vmul.f32 %v1015, %v1265
        %v1273 = vmul.f32 %v1016, %v1265
        %v1274 = vpack.c.bf16 %v1267, %v1266
        %v1275 = vpack.c.bf16 %v1269, %v1268
        %v1276 = vpack.c.bf16 %v1271, %v1270
        %v1277 = vpack.c.bf16 %v1273, %v1272
        %s1278 = scalar_lea.vmem %s1, 256
        %v1279 = vld [vmem:[%s1278] sm:$0xf]
        %v1280 = vld [vmem:[%s1278 + $0x4] sm:$0xf]
        %v1281 = vld [vmem:[%s1278 + $0x8] sm:$0xf]
        %v1282 = vld [vmem:[%s1278 + $0xc] sm:$0xf]
        %v1283 = vld [vmem:[%s1278 + $0x10] sm:$0xf]
        %v1284 = vld [vmem:[%s1278 + $0x14] sm:$0xf]
        %v1285 = vld [vmem:[%s1278 + $0x18] sm:$0xf]
        %v1286 = vld [vmem:[%s1278 + $0x1c] sm:$0xf]
        %v1287 = vld [vmem:[%s1278 + $0x20] sm:$0xf]
        %v1288 = vld [vmem:[%s1278 + $0x24] sm:$0xf]
        %v1289 = vld [vmem:[%s1278 + $0x28] sm:$0xf]
        %v1290 = vld [vmem:[%s1278 + $0x2c] sm:$0xf]
        %v1291 = vld [vmem:[%s1278 + $0x30] sm:$0xf]
        %v1292 = vld [vmem:[%s1278 + $0x34] sm:$0xf]
        %v1293 = vld [vmem:[%s1278 + $0x38] sm:$0xf]
        %v1294 = vld [vmem:[%s1278 + $0x3c] sm:$0xf]
        %v1311 = vunpack.c.l.b16 %v1279
        %v1312 = vunpack.c.l.b16 %v1280
        %v1313 = vunpack.c.l.b16 %v1281
        %v1314 = vunpack.c.l.b16 %v1282
        %v1315 = vunpack.c.l.b16 %v1283
        %v1316 = vunpack.c.l.b16 %v1284
        %v1317 = vunpack.c.l.b16 %v1285
        %v1318 = vunpack.c.l.b16 %v1286
        %v1319 = vunpack.c.l.b16 %v1287
        %v1320 = vunpack.c.l.b16 %v1288
        %v1321 = vunpack.c.l.b16 %v1289
        %v1322 = vunpack.c.l.b16 %v1290
        %v1323 = vunpack.c.l.b16 %v1291
        %v1324 = vunpack.c.l.b16 %v1292
        %v1325 = vunpack.c.l.b16 %v1293
        %v1326 = vunpack.c.l.b16 %v1294
        %v1327 = vpack.c.b16 %v1312, %v1311
        %v1328 = vpack.c.b16 %v1314, %v1313
        %v1329 = vpack.c.b16 %v1316, %v1315
        %v1330 = vpack.c.b16 %v1318, %v1317
        %v1331 = vpack.c.b16 %v1320, %v1319
        %v1332 = vpack.c.b16 %v1322, %v1321
        %v1333 = vpack.c.b16 %v1324, %v1323
        %v1334 = vpack.c.b16 %v1326, %v1325
        %1343 = vmatprep.subr.bf16.mxu0 0
        %1344 = vmatpush1.bf16.msra.mxu0 %v1334
        %1345 = vmatprep.subr.bf16.mxu0 0
        %1346 = vmatpush1.bf16.msra.mxu0 %v1333
        %1347 = vmatprep.subr.bf16.mxu0 0
        %1348 = vmatpush1.bf16.msra.mxu0 %v1332
        %1349 = vmatprep.subr.bf16.mxu0 0
        %1350 = vmatpush1.bf16.msra.mxu0 %v1331
        %1351 = vmatprep.subr.bf16.mxu0 0
        %1352 = vmatpush1.bf16.msra.mxu0 %v1330
        %1353 = vmatprep.subr.bf16.mxu0 0
        %1354 = vmatpush1.bf16.msra.mxu0 %v1329
        %1355 = vmatprep.subr.bf16.mxu0 0
        %1356 = vmatpush1.bf16.msra.mxu0 %v1328
        %1357 = vmatprep.subr.bf16.mxu0 0
        %1358 = vmatpush1.bf16.msra.mxu0 %v1327
        %1359 = vmatprep.subr.bf16.mxu0 0
        %1360 = vmatpush2.bf16.msra.mxu0 0
        %1361 = vmatprep.subr.bf16.mxu0 0
        %1362 = vmatpush2.bf16.msra.mxu0 0
        %1363 = vmatprep.subr.bf16.mxu0 0
        %1364 = vmatpush2.bf16.msra.mxu0 0
        %1365 = vmatprep.subr.bf16.mxu0 0
        %1366 = vmatpush2.bf16.msra.mxu0 0
        %1367 = vmatprep.subr.bf16.mxu0 0
        %1368 = vmatpush2.bf16.msra.mxu0 0
        %1369 = vmatprep.subr.bf16.mxu0 0
        %1370 = vmatpush2.bf16.msra.mxu0 0
        %1371 = vmatprep.subr.bf16.mxu0 0
        %1372 = vmatpush2.bf16.msra.mxu0 0
        %1373 = vmatprep.subr.bf16.mxu0 0
        %1374 = vmatpush2.bf16.msra.mxu0 0
        %1375 = vmatprep.mubr.bf16.mxu0 0
        %1376 = vmatmul.mubr.bf16.gmra.mxu0 %v1274
        %v1377 = vpop.f32.mrf.mxu0
        %v1378 = vadd.f32 0.0, %v1377
        %v1379 = vpop.f32.mrf.mxu0
        %v1380 = vpop.f32.mrf.mxu0
        %v1381 = vadd.f32 0.0, %v1380
        %v1382 = vpop.f32.mrf.mxu0
        %1383 = vmatprep.mubr.bf16.mxu0 0
        %1384 = vmatmul.mubr.bf16.gmra.mxu0 %v1275
        %v1385 = vpop.f32.mrf.mxu0
        %v1386 = vadd.f32 0.0, %v1385
        %v1387 = vpop.f32.mrf.mxu0
        %v1388 = vpop.f32.mrf.mxu0
        %v1389 = vadd.f32 0.0, %v1388
        %v1390 = vpop.f32.mrf.mxu0
        %1391 = vmatprep.mubr.bf16.mxu0 0
        %1392 = vmatmul.mubr.bf16.gmra.mxu0 %v1276
        %v1393 = vpop.f32.mrf.mxu0
        %v1394 = vadd.f32 0.0, %v1393
        %v1395 = vpop.f32.mrf.mxu0
        %v1396 = vpop.f32.mrf.mxu0
        %v1397 = vadd.f32 0.0, %v1396
        %v1398 = vpop.f32.mrf.mxu0
        %1399 = vmatprep.mubr.bf16.mxu0 0
        %1400 = vmatmul.mubr.bf16.gmra.mxu0 %v1277
        %v1401 = vpop.f32.mrf.mxu0
        %v1402 = vadd.f32 0.0, %v1401
        %v1403 = vpop.f32.mrf.mxu0
        %v1404 = vpop.f32.mrf.mxu0
        %v1405 = vadd.f32 0.0, %v1404
        %v1406 = vpop.f32.mrf.mxu0
        %1407 = vdwg.mxu0
        %v1408 = vlaneseq
        %v1409 = vshrl.u32 %v1408, 7
        %v1410 = vsub.s32 0, %v1409
        %v1411 = vrot.slane %v197, %v1410
        %v1412 = vmul.f32 %v1378, %v1411
        %v1413 = vmul.f32 %v1381, %v1411
        %v1414 = vmul.f32 %v1386, %v1411
        %v1415 = vmul.f32 %v1389, %v1411
        %v1416 = vmul.f32 %v1394, %v1411
        %v1417 = vmul.f32 %v1397, %v1411
        %v1418 = vmul.f32 %v1402, %v1411
        %v1419 = vmul.f32 %v1405, %v1411
        %v1420 = vlaneseq
        %v1421 = vshrl.u32 %v1420, 7
        %v1422 = vsub.s32 1, %v1421
        %v1423 = vrot.slane %v197, %v1422
        %v1424 = vadd.f32 %v1412, %v1423
        %v1425 = vadd.f32 %v1413, %v1423
        %v1426 = vadd.f32 %v1414, %v1423
        %v1427 = vadd.f32 %v1415, %v1423
        %v1428 = vadd.f32 %v1416, %v1423
        %v1429 = vadd.f32 %v1417, %v1423
        %v1430 = vadd.f32 %v1418, %v1423
        %v1431 = vadd.f32 %v1419, %v1423
        %v1432 = vadd.f32 %v1424, %v433
        %v1433 = vadd.f32 %v1425, %v434
        %v1434 = vadd.f32 %v1426, %v435
        %v1435 = vadd.f32 %v1427, %v436
        %v1436 = vadd.f32 %v1428, %v437
        %v1437 = vadd.f32 %v1429, %v438
        %v1438 = vadd.f32 %v1430, %v439
        %v1439 = vadd.f32 %v1431, %v440
        %v1440 = vpack.c.bf16 %v1433, %v1432
        %v1441 = vpack.c.bf16 %v1435, %v1434
        %v1442 = vpack.c.bf16 %v1437, %v1436
        %v1443 = vpack.c.bf16 %v1439, %v1438
        %s1444 = scalar_lea.vmem %s1, 320
        %v1445 = vld [vmem:[%s1444] sm:$0xf]
        %v1446 = vld [vmem:[%s1444 + $0x4] sm:$0xf]
        %v1447 = vld [vmem:[%s1444 + $0x8] sm:$0xf]
        %v1448 = vld [vmem:[%s1444 + $0xc] sm:$0xf]
        %v1449 = vld [vmem:[%s1444 + $0x10] sm:$0xf]
        %v1450 = vld [vmem:[%s1444 + $0x14] sm:$0xf]
        %v1451 = vld [vmem:[%s1444 + $0x18] sm:$0xf]
        %v1452 = vld [vmem:[%s1444 + $0x1c] sm:$0xf]
        %v1453 = vld [vmem:[%s1444 + $0x20] sm:$0xf]
        %v1454 = vld [vmem:[%s1444 + $0x24] sm:$0xf]
        %v1455 = vld [vmem:[%s1444 + $0x28] sm:$0xf]
        %v1456 = vld [vmem:[%s1444 + $0x2c] sm:$0xf]
        %v1457 = vld [vmem:[%s1444 + $0x30] sm:$0xf]
        %v1458 = vld [vmem:[%s1444 + $0x34] sm:$0xf]
        %v1459 = vld [vmem:[%s1444 + $0x38] sm:$0xf]
        %v1460 = vld [vmem:[%s1444 + $0x3c] sm:$0xf]
        %v1477 = vunpack.c.l.b16 %v1445
        %v1478 = vunpack.c.l.b16 %v1446
        %v1479 = vunpack.c.l.b16 %v1447
        %v1480 = vunpack.c.l.b16 %v1448
        %v1481 = vunpack.c.l.b16 %v1449
        %v1482 = vunpack.c.l.b16 %v1450
        %v1483 = vunpack.c.l.b16 %v1451
        %v1484 = vunpack.c.l.b16 %v1452
        %v1485 = vunpack.c.l.b16 %v1453
        %v1486 = vunpack.c.l.b16 %v1454
        %v1487 = vunpack.c.l.b16 %v1455
        %v1488 = vunpack.c.l.b16 %v1456
        %v1489 = vunpack.c.l.b16 %v1457
        %v1490 = vunpack.c.l.b16 %v1458
        %v1491 = vunpack.c.l.b16 %v1459
        %v1492 = vunpack.c.l.b16 %v1460
        %v1493 = vpack.c.b16 %v1478, %v1477
        %v1494 = vpack.c.b16 %v1480, %v1479
        %v1495 = vpack.c.b16 %v1482, %v1481
        %v1496 = vpack.c.b16 %v1484, %v1483
        %v1497 = vpack.c.b16 %v1486, %v1485
        %v1498 = vpack.c.b16 %v1488, %v1487
        %v1499 = vpack.c.b16 %v1490, %v1489
        %v1500 = vpack.c.b16 %v1492, %v1491
        %1509 = vmatprep.subr.bf16.mxu0 0
        %1510 = vmatpush1.bf16.msra.mxu0 %v1500
        %1511 = vmatprep.subr.bf16.mxu0 0
        %1512 = vmatpush1.bf16.msra.mxu0 %v1499
        %1513 = vmatprep.subr.bf16.mxu0 0
        %1514 = vmatpush1.bf16.msra.mxu0 %v1498
        %1515 = vmatprep.subr.bf16.mxu0 0
        %1516 = vmatpush1.bf16.msra.mxu0 %v1497
        %1517 = vmatprep.subr.bf16.mxu0 0
        %1518 = vmatpush1.bf16.msra.mxu0 %v1496
        %1519 = vmatprep.subr.bf16.mxu0 0
        %1520 = vmatpush1.bf16.msra.mxu0 %v1495
        %1521 = vmatprep.subr.bf16.mxu0 0
        %1522 = vmatpush1.bf16.msra.mxu0 %v1494
        %1523 = vmatprep.subr.bf16.mxu0 0
        %1524 = vmatpush1.bf16.msra.mxu0 %v1493
        %1525 = vmatprep.subr.bf16.mxu0 0
        %1526 = vmatpush2.bf16.msra.mxu0 0
        %1527 = vmatprep.subr.bf16.mxu0 0
        %1528 = vmatpush2.bf16.msra.mxu0 0
        %1529 = vmatprep.subr.bf16.mxu0 0
        %1530 = vmatpush2.bf16.msra.mxu0 0
        %1531 = vmatprep.subr.bf16.mxu0 0
        %1532 = vmatpush2.bf16.msra.mxu0 0
        %1533 = vmatprep.subr.bf16.mxu0 0
        %1534 = vmatpush2.bf16.msra.mxu0 0
        %1535 = vmatprep.subr.bf16.mxu0 0
        %1536 = vmatpush2.bf16.msra.mxu0 0
        %1537 = vmatprep.subr.bf16.mxu0 0
        %1538 = vmatpush2.bf16.msra.mxu0 0
        %1539 = vmatprep.subr.bf16.mxu0 0
        %1540 = vmatpush2.bf16.msra.mxu0 0
        %1541 = vmatprep.mubr.bf16.mxu0 0
        %1542 = vmatmul.mubr.bf16.gmra.mxu0 %v1440
        %v1543 = vpop.f32.mrf.mxu0
        %v1544 = vadd.f32 0.0, %v1543
        %v1545 = vpop.f32.mrf.mxu0
        %v1546 = vpop.f32.mrf.mxu0
        %v1547 = vadd.f32 0.0, %v1546
        %v1548 = vpop.f32.mrf.mxu0
        %1549 = vmatprep.mubr.bf16.mxu0 0
        %1550 = vmatmul.mubr.bf16.gmra.mxu0 %v1441
        %v1551 = vpop.f32.mrf.mxu0
        %v1552 = vadd.f32 0.0, %v1551
        %v1553 = vpop.f32.mrf.mxu0
        %v1554 = vpop.f32.mrf.mxu0
        %v1555 = vadd.f32 0.0, %v1554
        %v1556 = vpop.f32.mrf.mxu0
        %1557 = vmatprep.mubr.bf16.mxu0 0
        %1558 = vmatmul.mubr.bf16.gmra.mxu0 %v1442
        %v1559 = vpop.f32.mrf.mxu0
        %v1560 = vadd.f32 0.0, %v1559
        %v1561 = vpop.f32.mrf.mxu0
        %v1562 = vpop.f32.mrf.mxu0
        %v1563 = vadd.f32 0.0, %v1562
        %v1564 = vpop.f32.mrf.mxu0
        %1565 = vmatprep.mubr.bf16.mxu0 0
        %1566 = vmatmul.mubr.bf16.gmra.mxu0 %v1443
        %v1567 = vpop.f32.mrf.mxu0
        %v1568 = vadd.f32 0.0, %v1567
        %v1569 = vpop.f32.mrf.mxu0
        %v1570 = vpop.f32.mrf.mxu0
        %v1571 = vadd.f32 0.0, %v1570
        %v1572 = vpop.f32.mrf.mxu0
        %1573 = vdwg.mxu0
        %v1574 = vlaneseq
        %v1575 = vshrl.u32 %v1574, 7
        %v1576 = vsub.s32 2, %v1575
        %v1577 = vrot.slane %v197, %v1576
        %v1578 = vmul.f32 %v1544, %v1577
        %v1579 = vmul.f32 %v1547, %v1577
        %v1580 = vmul.f32 %v1552, %v1577
        %v1581 = vmul.f32 %v1555, %v1577
        %v1582 = vmul.f32 %v1560, %v1577
        %v1583 = vmul.f32 %v1563, %v1577
        %v1584 = vmul.f32 %v1568, %v1577
        %v1585 = vmul.f32 %v1571, %v1577
        %v1586 = vlaneseq
        %v1587 = vshrl.u32 %v1586, 7
        %v1588 = vsub.s32 3, %v1587
        %v1589 = vrot.slane %v197, %v1588
        %v1590 = vadd.f32 %v1578, %v1589
        %v1591 = vadd.f32 %v1579, %v1589
        %v1592 = vadd.f32 %v1580, %v1589
        %v1593 = vadd.f32 %v1581, %v1589
        %v1594 = vadd.f32 %v1582, %v1589
        %v1595 = vadd.f32 %v1583, %v1589
        %v1596 = vadd.f32 %v1584, %v1589
        %v1597 = vadd.f32 %v1585, %v1589
        %v1598 = vxor.u32 %v1590, 2147483648
        %v1599 = vxor.u32 %v1591, 2147483648
        %v1600 = vxor.u32 %v1592, 2147483648
        %v1601 = vxor.u32 %v1593, 2147483648
        %v1602 = vxor.u32 %v1594, 2147483648
        %v1603 = vxor.u32 %v1595, 2147483648
        %v1604 = vxor.u32 %v1596, 2147483648
        %v1605 = vxor.u32 %v1597, 2147483648
        %v1606 = vmul.f32 %v1598, 1.442695
        %v1607 = vpow.pop %v1606
        %v1608 = vmul.f32 %v1599, 1.442695
        %v1609 = vpow.pop %v1608
        %v1610 = vmul.f32 %v1600, 1.442695
        %v1611 = vpow.pop %v1610
        %v1612 = vmul.f32 %v1601, 1.442695
        %v1613 = vpow.pop %v1612
        %v1614 = vmul.f32 %v1602, 1.442695
        %v1615 = vpow.pop %v1614
        %v1616 = vmul.f32 %v1603, 1.442695
        %v1617 = vpow.pop %v1616
        %v1618 = vmul.f32 %v1604, 1.442695
        %v1619 = vpow.pop %v1618
        %v1620 = vmul.f32 %v1605, 1.442695
        %v1621 = vpow.pop %v1620
        %v1622 = vadd.f32 %v1607, 1.0
        %v1623 = vadd.f32 %v1609, 1.0
        %v1624 = vadd.f32 %v1611, 1.0
        %v1625 = vadd.f32 %v1613, 1.0
        %v1626 = vadd.f32 %v1615, 1.0
        %v1627 = vadd.f32 %v1617, 1.0
        %v1628 = vadd.f32 %v1619, 1.0
        %v1629 = vadd.f32 %v1621, 1.0
        %v1630 = vrcp.pop %v1622
        %v1631 = vmul.f32 1.0, %v1630
        %v1632 = vrcp.pop %v1623
        %v1633 = vmul.f32 1.0, %v1632
        %v1634 = vrcp.pop %v1624
        %v1635 = vmul.f32 1.0, %v1634
        %v1636 = vrcp.pop %v1625
        %v1637 = vmul.f32 1.0, %v1636
        %v1638 = vrcp.pop %v1626
        %v1639 = vmul.f32 1.0, %v1638
        %v1640 = vrcp.pop %v1627
        %v1641 = vmul.f32 1.0, %v1640
        %v1642 = vrcp.pop %v1628
        %v1643 = vmul.f32 1.0, %v1642
        %v1644 = vrcp.pop %v1629
        %v1645 = vmul.f32 1.0, %v1644
        %v1646 = vmul.f32 %v1590, %v1631
        %v1647 = vmul.f32 %v1591, %v1633
        %v1648 = vmul.f32 %v1592, %v1635
        %v1649 = vmul.f32 %v1593, %v1637
        %v1650 = vmul.f32 %v1594, %v1639
        %v1651 = vmul.f32 %v1595, %v1641
        %v1652 = vmul.f32 %v1596, %v1643
        %v1653 = vmul.f32 %v1597, %v1645
        %v1654 = vadd.f32 %v1646, %v1647
        %v1655 = vadd.f32 %v1654, %v1648
        %v1656 = vadd.f32 %v1655, %v1649
        %v1657 = vadd.f32 %v1656, %v1650
        %v1658 = vadd.f32 %v1657, %v1651
        %v1659 = vadd.f32 %v1658, %v1652
        %v1660 = vadd.f32 %v1659, %v1653
        %v1661 = vrot.slane %v1660, 4
        %v1662 = vadd.f32 %v1660, %v1661
        %v1663 = vrot.slane %v1662, 2
        %v1664 = vadd.f32 %v1662, %v1663
        %v1665 = vrot.slane %v1664, 1
        %v1666 = vadd.f32 %v1664, %v1665
        %v1667 = vmul.f32 %v1666, %v1030
        %v1668 = vpack.c.bf16 %v1667, %v1667
        %s1669 = scalar_lea.vmem %s1, 384
        %v1670 = vld [vmem:[%s1669] sm:$0xf]
        %v1671 = vld [vmem:[%s1669 + $0x4] sm:$0xf]
        %v1672 = vld [vmem:[%s1669 + $0x8] sm:$0xf]
        %v1673 = vld [vmem:[%s1669 + $0xc] sm:$0xf]
        %v1674 = vld [vmem:[%s1669 + $0x10] sm:$0xf]
        %v1675 = vld [vmem:[%s1669 + $0x14] sm:$0xf]
        %v1676 = vld [vmem:[%s1669 + $0x18] sm:$0xf]
        %v1677 = vld [vmem:[%s1669 + $0x1c] sm:$0xf]
        %v1678 = vld [vmem:[%s1669 + $0x20] sm:$0xf]
        %v1679 = vld [vmem:[%s1669 + $0x24] sm:$0xf]
        %v1680 = vld [vmem:[%s1669 + $0x28] sm:$0xf]
        %v1681 = vld [vmem:[%s1669 + $0x2c] sm:$0xf]
        %v1682 = vld [vmem:[%s1669 + $0x30] sm:$0xf]
        %v1683 = vld [vmem:[%s1669 + $0x34] sm:$0xf]
        %v1684 = vld [vmem:[%s1669 + $0x38] sm:$0xf]
        %v1685 = vld [vmem:[%s1669 + $0x3c] sm:$0xf]
        %v1702 = vunpack.c.l.b16 %v1670
        %v1703 = vunpack.c.l.b16 %v1671
        %v1704 = vunpack.c.l.b16 %v1672
        %v1705 = vunpack.c.l.b16 %v1673
        %v1706 = vunpack.c.l.b16 %v1674
        %v1707 = vunpack.c.l.b16 %v1675
        %v1708 = vunpack.c.l.b16 %v1676
        %v1709 = vunpack.c.l.b16 %v1677
        %v1710 = vunpack.c.l.b16 %v1678
        %v1711 = vunpack.c.l.b16 %v1679
        %v1712 = vunpack.c.l.b16 %v1680
        %v1713 = vunpack.c.l.b16 %v1681
        %v1714 = vunpack.c.l.b16 %v1682
        %v1715 = vunpack.c.l.b16 %v1683
        %v1716 = vunpack.c.l.b16 %v1684
        %v1717 = vunpack.c.l.b16 %v1685
        %v1718 = vpack.c.b16 %v1703, %v1702
        %v1719 = vpack.c.b16 %v1705, %v1704
        %v1720 = vpack.c.b16 %v1707, %v1706
        %v1721 = vpack.c.b16 %v1709, %v1708
        %v1722 = vpack.c.b16 %v1711, %v1710
        %v1723 = vpack.c.b16 %v1713, %v1712
        %v1724 = vpack.c.b16 %v1715, %v1714
        %v1725 = vpack.c.b16 %v1717, %v1716
        %v1735 = vrot.slane %v197, 4
        %1737 = vmatprep.subr.bf16.mxu0 0
        %1738 = vmatpush1.bf16.msra.mxu0 %v1725
        %1739 = vmatprep.subr.bf16.mxu0 0
        %1740 = vmatpush1.bf16.msra.mxu0 %v1724
        %1741 = vmatprep.subr.bf16.mxu0 0
        %1742 = vmatpush1.bf16.msra.mxu0 %v1723
        %1743 = vmatprep.subr.bf16.mxu0 0
        %1744 = vmatpush1.bf16.msra.mxu0 %v1722
        %1745 = vmatprep.subr.bf16.mxu0 0
        %1746 = vmatpush1.bf16.msra.mxu0 %v1721
        %1747 = vmatprep.subr.bf16.mxu0 0
        %1748 = vmatpush1.bf16.msra.mxu0 %v1720
        %1749 = vmatprep.subr.bf16.mxu0 0
        %1750 = vmatpush1.bf16.msra.mxu0 %v1719
        %1751 = vmatprep.subr.bf16.mxu0 0
        %1752 = vmatpush1.bf16.msra.mxu0 %v1718
        %1753 = vmatprep.subr.bf16.mxu0 0
        %1754 = vmatpush2.bf16.msra.mxu0 0
        %1755 = vmatprep.subr.bf16.mxu0 0
        %1756 = vmatpush2.bf16.msra.mxu0 0
        %1757 = vmatprep.subr.bf16.mxu0 0
        %1758 = vmatpush2.bf16.msra.mxu0 0
        %1759 = vmatprep.subr.bf16.mxu0 0
        %1760 = vmatpush2.bf16.msra.mxu0 0
        %1761 = vmatprep.subr.bf16.mxu0 0
        %1762 = vmatpush2.bf16.msra.mxu0 0
        %1763 = vmatprep.subr.bf16.mxu0 0
        %1764 = vmatpush2.bf16.msra.mxu0 0
        %1765 = vmatprep.subr.bf16.mxu0 0
        %1766 = vmatpush2.bf16.msra.mxu0 0
        %1767 = vmatprep.subr.bf16.mxu0 0
        %1768 = vmatpush2.bf16.msra.mxu0 0
        %1769 = vmatprep.mubr.bf16.mxu0 0
        %1770 = vmatmul.mubr.bf16.gmra.mxu0 %v1668
        %v1771 = vpop.f32.mrf.mxu0
        %v1772 = vadd.f32 %v1735, %v1771
        %v1773 = vpop.f32.mrf.mxu0
        %v1774 = vpop.f32.mrf.mxu0
        %v1775 = vpop.f32.mrf.mxu0
        %1776 = vdwg.mxu0
        %v1777 = vmax.f32 %v1772, 0.0
        %v1778 = vpack.c.bf16 %v1777, %v1777
        %s1779 = scalar_lea.vmem %s1, 448
        %v1780 = vld [vmem:[%s1779] sm:$0xf]
        %v1781 = vld [vmem:[%s1779 + $0x4] sm:$0xf]
        %v1782 = vld [vmem:[%s1779 + $0x8] sm:$0xf]
        %v1783 = vld [vmem:[%s1779 + $0xc] sm:$0xf]
        %v1784 = vld [vmem:[%s1779 + $0x10] sm:$0xf]
        %v1785 = vld [vmem:[%s1779 + $0x14] sm:$0xf]
        %v1786 = vld [vmem:[%s1779 + $0x18] sm:$0xf]
        %v1787 = vld [vmem:[%s1779 + $0x1c] sm:$0xf]
        %v1788 = vld [vmem:[%s1779 + $0x20] sm:$0xf]
        %v1789 = vld [vmem:[%s1779 + $0x24] sm:$0xf]
        %v1790 = vld [vmem:[%s1779 + $0x28] sm:$0xf]
        %v1791 = vld [vmem:[%s1779 + $0x2c] sm:$0xf]
        %v1792 = vld [vmem:[%s1779 + $0x30] sm:$0xf]
        %v1793 = vld [vmem:[%s1779 + $0x34] sm:$0xf]
        %v1794 = vld [vmem:[%s1779 + $0x38] sm:$0xf]
        %v1795 = vld [vmem:[%s1779 + $0x3c] sm:$0xf]
        %v1812 = vunpack.c.l.b16 %v1780
        %v1813 = vunpack.c.l.b16 %v1781
        %v1814 = vunpack.c.l.b16 %v1782
        %v1815 = vunpack.c.l.b16 %v1783
        %v1816 = vunpack.c.l.b16 %v1784
        %v1817 = vunpack.c.l.b16 %v1785
        %v1818 = vunpack.c.l.b16 %v1786
        %v1819 = vunpack.c.l.b16 %v1787
        %v1820 = vunpack.c.l.b16 %v1788
        %v1821 = vunpack.c.l.b16 %v1789
        %v1822 = vunpack.c.l.b16 %v1790
        %v1823 = vunpack.c.l.b16 %v1791
        %v1824 = vunpack.c.l.b16 %v1792
        %v1825 = vunpack.c.l.b16 %v1793
        %v1826 = vunpack.c.l.b16 %v1794
        %v1827 = vunpack.c.l.b16 %v1795
        %v1828 = vpack.c.b16 %v1813, %v1812
        %v1829 = vpack.c.b16 %v1815, %v1814
        %v1830 = vpack.c.b16 %v1817, %v1816
        %v1831 = vpack.c.b16 %v1819, %v1818
        %v1832 = vpack.c.b16 %v1821, %v1820
        %v1833 = vpack.c.b16 %v1823, %v1822
        %v1834 = vpack.c.b16 %v1825, %v1824
        %v1835 = vpack.c.b16 %v1827, %v1826
        %v1844 = vrot.slane %v197, 5
        %1846 = vmatprep.subr.bf16.mxu0 0
        %1847 = vmatpush1.bf16.msra.mxu0 %v1835
        %1848 = vmatprep.subr.bf16.mxu0 0
        %1849 = vmatpush1.bf16.msra.mxu0 %v1834
        %1850 = vmatprep.subr.bf16.mxu0 0
        %1851 = vmatpush1.bf16.msra.mxu0 %v1833
        %1852 = vmatprep.subr.bf16.mxu0 0
        %1853 = vmatpush1.bf16.msra.mxu0 %v1832
        %1854 = vmatprep.subr.bf16.mxu0 0
        %1855 = vmatpush1.bf16.msra.mxu0 %v1831
        %1856 = vmatprep.subr.bf16.mxu0 0
        %1857 = vmatpush1.bf16.msra.mxu0 %v1830
        %1858 = vmatprep.subr.bf16.mxu0 0
        %1859 = vmatpush1.bf16.msra.mxu0 %v1829
        %1860 = vmatprep.subr.bf16.mxu0 0
        %1861 = vmatpush1.bf16.msra.mxu0 %v1828
        %1862 = vmatprep.subr.bf16.mxu0 0
        %1863 = vmatpush2.bf16.msra.mxu0 0
        %1864 = vmatprep.subr.bf16.mxu0 0
        %1865 = vmatpush2.bf16.msra.mxu0 0
        %1866 = vmatprep.subr.bf16.mxu0 0
        %1867 = vmatpush2.bf16.msra.mxu0 0
        %1868 = vmatprep.subr.bf16.mxu0 0
        %1869 = vmatpush2.bf16.msra.mxu0 0
        %1870 = vmatprep.subr.bf16.mxu0 0
        %1871 = vmatpush2.bf16.msra.mxu0 0
        %1872 = vmatprep.subr.bf16.mxu0 0
        %1873 = vmatpush2.bf16.msra.mxu0 0
        %1874 = vmatprep.subr.bf16.mxu0 0
        %1875 = vmatpush2.bf16.msra.mxu0 0
        %1876 = vmatprep.subr.bf16.mxu0 0
        %1877 = vmatpush2.bf16.msra.mxu0 0
        %1878 = vmatprep.mubr.bf16.mxu0 0
        %1879 = vmatmul.mubr.bf16.gmra.mxu0 %v1778
        %v1880 = vpop.f32.mrf.mxu0
        %v1881 = vadd.f32 %v1844, %v1880
        %v1882 = vpop.f32.mrf.mxu0
        %v1883 = vpop.f32.mrf.mxu0
        %v1884 = vpop.f32.mrf.mxu0
        %1885 = vdwg.mxu0
        %1886 = vst [vmem:[%s189] sm:$0x1] %v1881
        %s1887 = sand.u32 %s115, 1
        %s1888 = scalar_lea.sflag [#allocation4], %s1887
        %s1889 = sand.u32 %s115, 1
        %s1890 = scalar_lea.vmem [#allocation3], %s1889
        // Predicated region
        $region37: #{diabetic_retinopathy_forward.1} parent=35 // pred_check
          %p1891 = pneg %p125
        $region38: #{diabetic_retinopathy_forward.1} parent=35 // pred_check_branch
          %1893 = sbr.rel (%p1891) target = $region40
        $region39: #{diabetic_retinopathy_forward.1} parent=35 // pred_region
          %s1895 = ssub.s32 16, 16
          %1896 = vsyncadd %s1888, %s1895
          %s1897 = smul.addr %s18, 16
          %s1898 = scalar_lea.hbm %s4, %s1897
          %s1900 = sshll.u32 %s1890, 4
          %s1901 = int_to_ptr.vmem [resolvable:$true] %s1900
          %1903 = dma.vmem_to_hbm [thread:$0]  %s1901, 16, %s1898, %s1888
        $region40: #{diabetic_retinopathy_forward.1} parent=35 // pred_fallthru
          _
      $region36: #{diabetic_retinopathy_forward.1} parent=5 // pred_fallthru
        _
      %p1904 = scmp.le.s32.totalorder 2, %s13
      // Predicated region
      $region41: #{diabetic_retinopathy_forward.1} parent=5 // pred_check
        %p1905 = pneg %p1904
      $region42: #{diabetic_retinopathy_forward.1} parent=5 // pred_check_branch
        %1907 = sbr.rel (%p1905) target = $region44
      $region43: #{diabetic_retinopathy_forward.1} parent=5 // pred_region
        %s1908 = ssub.s32 %s13, 2
        // Predicated region
        $region45: #{diabetic_retinopathy_forward.1} parent=43 // pred_check
          %p1909 = pneg %p131
        $region46: #{diabetic_retinopathy_forward.1} parent=43 // pred_check_branch
          %1911 = sbr.rel (%p1909) target = $region48
        $region47: #{diabetic_retinopathy_forward.1} parent=43 // pred_region
          %s1912 = sand.u32 %s116, 1
          %s1913 = scalar_lea.sflag [#allocation4], %s1912
          %s1914 = sand.u32 %s116, 1
          %s1915 = scalar_lea.vmem [#allocation3], %s1914
          %1916 = dma.done %s1913, 16
        $region48: #{diabetic_retinopathy_forward.1} parent=43 // pred_fallthru
          _
      $region44: #{diabetic_retinopathy_forward.1} parent=5 // pred_fallthru
        _
    $region6: #{diabetic_retinopathy_forward.1} parent=1 // loop_footer
      %s17 = sadd.s32 1, %s13
    $region7: #{diabetic_retinopathy_forward.1} parent=1 // loop_footer_branch
      %12 = sbr.rel target = $region3
    $region8: #{diabetic_retinopathy_forward.1} parent=1 // loop_exit
      _
    %1917 = vsyncpa [#allocation4], 1
    %s1918 = scalar_lea.sflag [#allocation4], 1
    %1919 = vsyncpa %s1918, 1

</llo_original>
